<compile_context>
chip_gen: v6e
topology: v6e:2x2x1
jax: 0.10.0
libtpu: 0.0.40
codegen_flags: <defaults>
</compile_context>

<pallas_src>
import functools

import jax
import jax.numpy as jnp
import numpy as np
from jax.experimental import pallas as pl
from jax.experimental.pallas import tpu as pltpu


def _relu(v):
    return jnp.maximum(v, 0.0)


def _round_up(n, m=128):
    return ((n + m - 1) // m) * m


# ---------------------------------------------------------------------------
# Kernel
# ---------------------------------------------------------------------------
def autoencoder_kernel(
    x_ref,                       # (TB, feats_p)               bf16 (pre-cast, lane-padded)
    w_xz_ref, b_xz_ref,          # encX_Z : (feats_p, z_p) bf16, (1, z_p) f32
    w_zk_ref, b_zk_ref,          # encZ_K (fused KA|KC): (z_p, k_p) bf16, (1, k_p) f32
    w_kz_ref, b_kz_ref,          # decK_Z : (k_p, z_p) bf16, (1, z_p) f32
    w_zx_ref, b_zx_ref,          # decZ_X : (z_p, feats_p) bf16, (1, feats_p) f32
    w_head_ref, b_head_ref,      # fused [conv-as-dense | decKC_disC]: (k_p, head_p) bf16, (1, head_p) f32
    k_ref,                       # out: (TB, k_p)      = [ka | kc | 0-pad]
    x1_ref,                      # out: (TB, feats_p)  = [x1 | 0-pad]
    head_ref,                    # out: (TB, head_p)   = [a1 | ac | pad]
):
    mm_dtype = w_xz_ref.dtype
    x = x_ref[...]               # already bf16, no in-kernel cast needed

    # ---- encode ----
    z = _relu(jnp.dot(x, w_xz_ref[...],
                      preferred_element_type=jnp.float32) + b_xz_ref[...])

    # fused encZ_KA / encZ_KC -> k = [ka | kc]; no concatenate needed later.
    k = _relu(jnp.dot(z.astype(mm_dtype), w_zk_ref[...],
                      preferred_element_type=jnp.float32) + b_zk_ref[...])
    k_ref[...] = k
    km = k.astype(mm_dtype)

    # ---- decode (x reconstruction) ----
    z1 = _relu(jnp.dot(km, w_kz_ref[...],
                       preferred_element_type=jnp.float32) + b_kz_ref[...])
    x1_ref[...] = _relu(jnp.dot(z1.astype(mm_dtype), w_zx_ref[...],
                                preferred_element_type=jnp.float32)
                        + b_zx_ref[...])

    # ---- fused attribute heads: [a1 | ac] in one MXU dot ----
    # (1x1 conv expressed as dense block-diagonal weight; GRL is identity fwd)
    head_ref[...] = jax.nn.sigmoid(
        jnp.dot(km, w_head_ref[...], preferred_element_type=jnp.float32)
        + b_head_ref[...])


# ---------------------------------------------------------------------------
# Wrapper-side parameter fusion / padding
# ---------------------------------------------------------------------------
def prepare_fused_params(params, *, ka_dim, nb_attributes,
                         mm_dtype=jnp.bfloat16):
    """Fuse / repack / lane-pad the raw (torch-equivalent) params."""
    (w_xz, b_xz, w_zka, b_zka, w_zkc, b_zkc,
     w_kz, b_kz, w_zx, b_zx, conv_w, conv_b, w_ac, b_ac) = params
    A = nb_attributes
    ka_tot = ka_dim * A
    kc_dim = w_zkc.shape[1]
    feats_dim, z_dim = w_xz.shape
    k_width = ka_tot + kc_dim

    feats_p = _round_up(feats_dim)
    z_p = _round_up(z_dim)
    k_p = _round_up(k_width)
    head_p = _round_up(2 * A)

    # Fused encoder heads: [ka | kc].
    w_zk = jnp.concatenate([w_zka, w_zkc], axis=1)
    b_zk = jnp.concatenate([b_zka, b_zkc], axis=1)

    # 1x1 Conv1d(ka_dim -> 1) over ka.view(B, ka_dim, A) as a dense matmul:
    #   W_conv[kd*A + a, a] = conv_w[0, kd]
    eye_a = jnp.eye(A, dtype=jnp.float32)
    w_conv_dense = (conv_w[0][:, None, None] * eye_a[None, :, :]).reshape(ka_tot, A)

    # Fused attribute heads: first A cols <- conv on ka rows, last A <- w_ac on kc rows.
    w_head = jnp.zeros((k_width, 2 * A), jnp.float32)
    w_head = w_head.at[:ka_tot, :A].set(w_conv_dense)
    w_head = w_head.at[ka_tot:, A:].set(w_ac)
    b_head = jnp.concatenate([jnp.broadcast_to(conv_b, (1, A)), b_ac], axis=1)

    # Zero-pad everything to 128-lane-dense widths (pads contribute exact 0s).
    def pad2(w, rows, cols):
        return jnp.pad(w, ((0, rows - w.shape[0]), (0, cols - w.shape[1])))

    w_xz_p, b_xz_p = pad2(w_xz, feats_p, z_p), pad2(b_xz, 1, z_p)
    w_zk_p, b_zk_p = pad2(w_zk, z_p, k_p), pad2(b_zk, 1, k_p)
    w_kz_p, b_kz_p = pad2(w_kz, k_p, z_p), pad2(b_kz, 1, z_p)
    w_zx_p, b_zx_p = pad2(w_zx, z_p, feats_p), pad2(b_zx, 1, feats_p)
    w_head_p, b_head_p = pad2(w_head, k_p, head_p), pad2(b_head, 1, head_p)

    cast = lambda w: w.astype(mm_dtype)
    return (cast(w_xz_p), b_xz_p.astype(jnp.float32),
            cast(w_zk_p), b_zk_p.astype(jnp.float32),
            cast(w_kz_p), b_kz_p.astype(jnp.float32),
            cast(w_zx_p), b_zx_p.astype(jnp.float32),
            cast(w_head_p), b_head_p.astype(jnp.float32))


# ---------------------------------------------------------------------------
# Forward wrapper
# ---------------------------------------------------------------------------
def autoencoder_forward(x, fused_params, *, feats_dim, z_dim, ka_dim, kc_dim,
                        nb_attributes, tile_b=None, mm_dtype=jnp.bfloat16):
    B = x.shape[0]
    A = nb_attributes
    ka_tot = ka_dim * A
    k_width = ka_tot + kc_dim
    head_width = 2 * A

    feats_p = _round_up(feats_dim)
    z_p = _round_up(z_dim)
    k_p = _round_up(k_width)
    head_p = _round_up(head_width)

    # bf16, lane-padded input: halves the dominant input DMA stream.
    x_p = x.astype(mm_dtype)
    if feats_p != feats_dim:
        x_p = jnp.pad(x_p, ((0, 0), (0, feats_p - feats_dim)))

    # Batch tile: large (amortize ~0.35us/step), multiple of 16 sublanes
    # (bf16 packing), and >=2 grid steps when B allows so the "parallel" axis
    # can shard across v7x's two TensorCores.
    if tile_b is None:
        tile_b = B if B < 32 else min(1024, max(16, B // 2))
    tile_b = min(tile_b, B)
    if tile_b < B:
        tile_b = max(16, (tile_b // 16) * 16)
    grid = (pl.cdiv(B, tile_b),)

    out_shapes = (
        jax.ShapeDtypeStruct((B, k_p), jnp.float32),      # [ka | kc | pad]
        jax.ShapeDtypeStruct((B, feats_p), jnp.float32),  # [x1 | pad]
        jax.ShapeDtypeStruct((B, head_p), jnp.float32),   # [a1 | ac | pad]
    )

    # --- VMEM budget (generation-aware) ---
    try:
        vmem_cap = int(pltpu.get_tpu_info().vmem_capacity_bytes)
    except Exception:
        vmem_cap = 128 << 20
    weight_bytes = sum(int(p.size) * p.dtype.itemsize for p in fused_params)
    need = (2 * tile_b * feats_p * 2                       # double-buffered bf16 x
            + 2 * weight_bytes                             # weights (worst case 2x)
            + 2 * tile_b * (k_p + feats_p + head_p) * 4    # double-buffered outputs
            + tile_b * (z_p + k_p + feats_p + head_p) * 6  # f32 + bf16 intermediates
            + (4 << 20))                                   # Mosaic internal scratch slack
    vmem_limit = int(min(max(need, 16 << 20), int(0.75 * vmem_cap)))

    # --- Cost estimate (helps XLA schedule around the custom call) ---
    flops = 2 * B * (feats_p * z_p + z_p * k_p + k_p * z_p
                     + z_p * feats_p + k_p * head_p)
    bytes_accessed = (B * feats_p * 2 + weight_bytes
                      + B * (k_p + feats_p + head_p) * 4)
    cost = pl.CostEstimate(flops=int(flops),
                           transcendentals=int(B * head_p),
                           bytes_accessed=int(bytes_accessed))

    def build(buffered_weights):
        def batch_spec(width):
            return pl.BlockSpec((tile_b, width), lambda i: (i, 0))

        if buffered_weights:
            def resident_spec(arr):
                # Constant index_map -> single-buffer the resident weights.
                return pl.BlockSpec(arr.shape, lambda i: (0, 0),
                                    pipeline_mode=pl.Buffered(1))
        else:
            def resident_spec(arr):
                return pl.BlockSpec(arr.shape, lambda i: (0, 0))

        in_specs = [batch_spec(feats_p)] + [resident_spec(p) for p in fused_params]
        out_specs = (batch_spec(k_p), batch_spec(feats_p), batch_spec(head_p))

        return pl.pallas_call(
            autoencoder_kernel,
            out_shape=out_shapes,
            grid_spec=pltpu.PrefetchScalarGridSpec(
                num_scalar_prefetch=0,
                grid=grid,
                in_specs=in_specs,
                out_specs=out_specs,
            ),
            compiler_params=pltpu.CompilerParams(
                dimension_semantics=("parallel",),
                vmem_limit_bytes=vmem_limit),
            cost_estimate=cost,
        )

    try:
        k, x1p, head = build(True)(x_p, *fused_params)
    except Exception:
        # pipeline_mode=Buffered(1) not supported by this JAX/Mosaic build;
        # fall back to default double-buffered resident weights.
        k, x1p, head = build(False)(x_p, *fused_params)

    ka = k[:, :ka_tot]
    kc = k[:, ka_tot:k_width]
    x1 = x1p[:, :feats_dim]
    a1 = head[:, :A]
    ac = head[:, A:head_width]
    ad = None  # attr_dis=False in the default forward
    return ka, kc, x1, a1, ac, ad


# ---------------------------------------------------------------------------
# Params + pure-JAX reference (mirrors the PyTorch forward)
# ---------------------------------------------------------------------------
def init_params(key, *, feats_dim, z_dim, ka_dim, kc_dim, nb_attributes):
    """Deterministic synthetic weights. Linear weights stored as (in, out)."""
    keys = jax.random.split(key, 16)

    def lin(k, i, o):
        s = 1.0 / np.sqrt(i)
        kw, kb = jax.random.split(k)
        w = jax.random.uniform(kw, (i, o), jnp.float32, -s, s)
        b = jax.random.uniform(kb, (1, o), jnp.float32, -s, s)
        return w, b

    ka_tot = ka_dim * nb_attributes
    w_xz, b_xz = lin(keys[0], feats_dim, z_dim)
    w_zka, b_zka = lin(keys[1], z_dim, ka_tot)
    w_zkc, b_zkc = lin(keys[2], z_dim, kc_dim)
    w_kz, b_kz = lin(keys[3], ka_tot + kc_dim, z_dim)
    w_zx, b_zx = lin(keys[4], z_dim, feats_dim)
    conv_w = jax.random.uniform(keys[5], (1, ka_dim), jnp.float32,
                                -1.0 / np.sqrt(ka_dim), 1.0 / np.sqrt(ka_dim))
    conv_b = jax.random.uniform(keys[6], (1, 1), jnp.float32,
                                -1.0 / np.sqrt(ka_dim), 1.0 / np.sqrt(ka_dim))
    w_ac, b_ac = lin(keys[7], kc_dim, nb_attributes)
    return (w_xz, b_xz, w_zka, b_zka, w_zkc, b_zkc,
            w_kz, b_kz, w_zx, b_zx, conv_w, conv_b, w_ac, b_ac)


def reference_forward(x, params, *, ka_dim, nb_attributes,
                      mm_dtype=jnp.bfloat16):
    """Pure-JAX reference mirroring the PyTorch forward, with the same
    bf16-matmul / f32-accumulate precision policy as the kernel."""
    (w_xz, b_xz, w_zka, b_zka, w_zkc, b_zkc,
     w_kz, b_kz, w_zx, b_zx, conv_w, conv_b, w_ac, b_ac) = params
    relu = lambda v: jnp.maximum(v, 0.0)

    def mm(a, w):
        return jnp.dot(a.astype(mm_dtype), w.astype(mm_dtype),
                       preferred_element_type=jnp.float32)

    z = relu(mm(x, w_xz) + b_xz)
    ka = relu(mm(z, w_zka) + b_zka)
    kc = relu(mm(z, w_zkc) + b_zkc)
    z1 = relu(mm(jnp.concatenate([ka, kc], axis=1), w_kz) + b_kz)
    x1 = relu(mm(z1, w_zx) + b_zx)
    ka3 = ka.reshape(ka.shape[0], ka_dim, nb_attributes)  # torch .view semantics
    a1 = jax.nn.sigmoid(
        jnp.einsum("bka,k->ba", ka3.astype(mm_dtype), conv_w[0].astype(mm_dtype),
                   preferred_element_type=jnp.float32) + conv_b[0, 0])
    ac = jax.nn.sigmoid(mm(kc, w_ac) + b_ac)
    return ka, kc, x1, a1, ac, None


if __name__ == "__main__":
    # Small, forward-consistent shapes (batch large enough to exercise the grid).
    B = 64
    feats_dim = 32
    z_dim = 16
    ka_dim = 4
    kc_dim = 8
    nb_attributes = 8

    key = jax.random.PRNGKey(0)
    k_x, k_p = jax.random.split(key)
    x = jax.random.normal(k_x, (B, feats_dim), jnp.float32)
    params = init_params(k_p, feats_dim=feats_dim, z_dim=z_dim, ka_dim=ka_dim,
                         kc_dim=kc_dim, nb_attributes=nb_attributes)
    fused = prepare_fused_params(params, ka_dim=ka_dim,
                                 nb_attributes=nb_attributes)

    fwd = functools.partial(autoencoder_forward, feats_dim=feats_dim,
                            z_dim=z_dim, ka_dim=ka_dim, kc_dim=kc_dim,
                            nb_attributes=nb_attributes)   # tile_b auto: grid=(2,)
    ka, kc, x1, a1, ac, ad = fwd(x, fused)
    jax.block_until_ready((ka, kc, x1, a1, ac))

    # Validate against the pure-JAX reference (same precision policy).
    ref = reference_forward(x, params, ka_dim=ka_dim,
                            nb_attributes=nb_attributes)
    for got, want in zip((ka, kc, x1, a1, ac), ref[:5]):
        np.testing.assert_allclose(np.asarray(got), np.asarray(want),
                                   rtol=1e-3, atol=1e-3)
    assert ad is None and ref[5] is None

    print("KERNEL_OK")
</pallas_src>

<mosaic_0001>
module attributes {stable_mosaic.version = 11 : i64} {
  func.func @autoencoder_kernel(%arg0: i32, %arg1: memref<32x128xbf16, #tpu.memory_space<vmem>>, %arg2: memref<128x128xbf16, #tpu.memory_space<vmem>>, %arg3: memref<1x128xf32, #tpu.memory_space<vmem>>, %arg4: memref<128x128xbf16, #tpu.memory_space<vmem>>, %arg5: memref<1x128xf32, #tpu.memory_space<vmem>>, %arg6: memref<128x128xbf16, #tpu.memory_space<vmem>>, %arg7: memref<1x128xf32, #tpu.memory_space<vmem>>, %arg8: memref<128x128xbf16, #tpu.memory_space<vmem>>, %arg9: memref<1x128xf32, #tpu.memory_space<vmem>>, %arg10: memref<128x128xbf16, #tpu.memory_space<vmem>>, %arg11: memref<1x128xf32, #tpu.memory_space<vmem>>, %arg12: memref<32x128xf32, #tpu.memory_space<vmem>>, %arg13: memref<32x128xf32, #tpu.memory_space<vmem>>, %arg14: memref<32x128xf32, #tpu.memory_space<vmem>>) attributes {dimension_semantics = [#tpu.dimension_semantics<parallel>], iteration_bounds = array<i64: 2>, scalar_prefetch = 0 : i64, scratch_operands = 0 : i64, tpu.core_type = #tpu.core_type<tc>, window_params = [{transform_indices = @transform_0, window_bounds = array<i64: 32, 128>}, {pipeline_mode = #tpu.pipeline_mode<synchronous>, transform_indices = @transform_1, window_bounds = array<i64: 128, 128>}, {pipeline_mode = #tpu.pipeline_mode<synchronous>, transform_indices = @transform_2, window_bounds = array<i64: 1, 128>}, {pipeline_mode = #tpu.pipeline_mode<synchronous>, transform_indices = @transform_3, window_bounds = array<i64: 128, 128>}, {pipeline_mode = #tpu.pipeline_mode<synchronous>, transform_indices = @transform_4, window_bounds = array<i64: 1, 128>}, {pipeline_mode = #tpu.pipeline_mode<synchronous>, transform_indices = @transform_5, window_bounds = array<i64: 128, 128>}, {pipeline_mode = #tpu.pipeline_mode<synchronous>, transform_indices = @transform_6, window_bounds = array<i64: 1, 128>}, {pipeline_mode = #tpu.pipeline_mode<synchronous>, transform_indices = @transform_7, window_bounds = array<i64: 128, 128>}, {pipeline_mode = #tpu.pipeline_mode<synchronous>, transform_indices = @transform_8, window_bounds = array<i64: 1, 128>}, {pipeline_mode = #tpu.pipeline_mode<synchronous>, transform_indices = @transform_9, window_bounds = array<i64: 128, 128>}, {pipeline_mode = #tpu.pipeline_mode<synchronous>, transform_indices = @transform_10, window_bounds = array<i64: 1, 128>}, {transform_indices = @transform_11, window_bounds = array<i64: 32, 128>}, {transform_indices = @transform_12, window_bounds = array<i64: 32, 128>}, {transform_indices = @transform_13, window_bounds = array<i64: 32, 128>}]} {
    %c0 = arith.constant 0 : index
    %c0_0 = arith.constant 0 : index
    %0 = vector.load %arg1[%c0, %c0_0] : memref<32x128xbf16, #tpu.memory_space<vmem>>, vector<32x128xbf16>
    %c0_1 = arith.constant 0 : index
    %c0_2 = arith.constant 0 : index
    %1 = vector.load %arg2[%c0_1, %c0_2] : memref<128x128xbf16, #tpu.memory_space<vmem>>, vector<128x128xbf16>
    %cst = arith.constant dense<0.000000e+00> : vector<32x128xf32>
    %2 = tpu.matmul %0, %1, %cst {dimension_numbers = #tpu.dot_dimension_numbers<[1], [0], [0], [1], [0, 0, 1, 1], [], []>} : vector<32x128xbf16>, vector<128x128xbf16>, vector<32x128xf32> -> vector<32x128xf32>
    %c0_3 = arith.constant 0 : index
    %c0_4 = arith.constant 0 : index
    %3 = vector.load %arg3[%c0_3, %c0_4] : memref<1x128xf32, #tpu.memory_space<vmem>>, vector<1x128xf32>
    %4 = vector.broadcast %3 : vector<1x128xf32> to vector<32x128xf32>
    %5 = arith.addf %2, %4 : vector<32x128xf32>
    %cst_5 = arith.constant 0.000000e+00 : f32
    %6 = vector.broadcast %cst_5 : f32 to vector<32x128xf32>
    %7 = arith.maximumf %5, %6 : vector<32x128xf32>
    %8 = arith.truncf %7 : vector<32x128xf32> to vector<32x128xbf16>
    %c0_6 = arith.constant 0 : index
    %c0_7 = arith.constant 0 : index
    %9 = vector.load %arg4[%c0_6, %c0_7] : memref<128x128xbf16, #tpu.memory_space<vmem>>, vector<128x128xbf16>
    %cst_8 = arith.constant dense<0.000000e+00> : vector<32x128xf32>
    %10 = tpu.matmul %8, %9, %cst_8 {dimension_numbers = #tpu.dot_dimension_numbers<[1], [0], [0], [1], [0, 0, 1, 1], [], []>} : vector<32x128xbf16>, vector<128x128xbf16>, vector<32x128xf32> -> vector<32x128xf32>
    %c0_9 = arith.constant 0 : index
    %c0_10 = arith.constant 0 : index
    %11 = vector.load %arg5[%c0_9, %c0_10] : memref<1x128xf32, #tpu.memory_space<vmem>>, vector<1x128xf32>
    %12 = vector.broadcast %11 : vector<1x128xf32> to vector<32x128xf32>
    %13 = arith.addf %10, %12 : vector<32x128xf32>
    %cst_11 = arith.constant 0.000000e+00 : f32
    %14 = vector.broadcast %cst_11 : f32 to vector<32x128xf32>
    %15 = arith.maximumf %13, %14 : vector<32x128xf32>
    %c0_12 = arith.constant 0 : index
    %c0_13 = arith.constant 0 : index
    %16 = vector.load %arg12[%c0_12, %c0_13] : memref<32x128xf32, #tpu.memory_space<vmem>>, vector<32x128xf32>
    tpu.vector_store %arg12[%c0_12, %c0_13], %15 {strides = array<i32>} : memref<32x128xf32, #tpu.memory_space<vmem>>, vector<32x128xf32>,
    %17 = arith.truncf %15 : vector<32x128xf32> to vector<32x128xbf16>
    %c0_14 = arith.constant 0 : index
    %c0_15 = arith.constant 0 : index
    %18 = vector.load %arg6[%c0_14, %c0_15] : memref<128x128xbf16, #tpu.memory_space<vmem>>, vector<128x128xbf16>
    %cst_16 = arith.constant dense<0.000000e+00> : vector<32x128xf32>
    %19 = tpu.matmul %17, %18, %cst_16 {dimension_numbers = #tpu.dot_dimension_numbers<[1], [0], [0], [1], [0, 0, 1, 1], [], []>} : vector<32x128xbf16>, vector<128x128xbf16>, vector<32x128xf32> -> vector<32x128xf32>
    %c0_17 = arith.constant 0 : index
    %c0_18 = arith.constant 0 : index
    %20 = vector.load %arg7[%c0_17, %c0_18] : memref<1x128xf32, #tpu.memory_space<vmem>>, vector<1x128xf32>
    %21 = vector.broadcast %20 : vector<1x128xf32> to vector<32x128xf32>
    %22 = arith.addf %19, %21 : vector<32x128xf32>
    %cst_19 = arith.constant 0.000000e+00 : f32
    %23 = vector.broadcast %cst_19 : f32 to vector<32x128xf32>
    %24 = arith.maximumf %22, %23 : vector<32x128xf32>
    %25 = arith.truncf %24 : vector<32x128xf32> to vector<32x128xbf16>
    %c0_20 = arith.constant 0 : index
    %c0_21 = arith.constant 0 : index
    %26 = vector.load %arg8[%c0_20, %c0_21] : memref<128x128xbf16, #tpu.memory_space<vmem>>, vector<128x128xbf16>
    %cst_22 = arith.constant dense<0.000000e+00> : vector<32x128xf32>
    %27 = tpu.matmul %25, %26, %cst_22 {dimension_numbers = #tpu.dot_dimension_numbers<[1], [0], [0], [1], [0, 0, 1, 1], [], []>} : vector<32x128xbf16>, vector<128x128xbf16>, vector<32x128xf32> -> vector<32x128xf32>
    %c0_23 = arith.constant 0 : index
    %c0_24 = arith.constant 0 : index
    %28 = vector.load %arg9[%c0_23, %c0_24] : memref<1x128xf32, #tpu.memory_space<vmem>>, vector<1x128xf32>
    %29 = vector.broadcast %28 : vector<1x128xf32> to vector<32x128xf32>
    %30 = arith.addf %27, %29 : vector<32x128xf32>
    %cst_25 = arith.constant 0.000000e+00 : f32
    %31 = vector.broadcast %cst_25 : f32 to vector<32x128xf32>
    %32 = arith.maximumf %30, %31 : vector<32x128xf32>
    %c0_26 = arith.constant 0 : index
    %c0_27 = arith.constant 0 : index
    %33 = vector.load %arg13[%c0_26, %c0_27] : memref<32x128xf32, #tpu.memory_space<vmem>>, vector<32x128xf32>
    tpu.vector_store %arg13[%c0_26, %c0_27], %32 {strides = array<i32>} : memref<32x128xf32, #tpu.memory_space<vmem>>, vector<32x128xf32>,
    %c0_28 = arith.constant 0 : index
    %c0_29 = arith.constant 0 : index
    %34 = vector.load %arg10[%c0_28, %c0_29] : memref<128x128xbf16, #tpu.memory_space<vmem>>, vector<128x128xbf16>
    %cst_30 = arith.constant dense<0.000000e+00> : vector<32x128xf32>
    %35 = tpu.matmul %17, %34, %cst_30 {dimension_numbers = #tpu.dot_dimension_numbers<[1], [0], [0], [1], [0, 0, 1, 1], [], []>} : vector<32x128xbf16>, vector<128x128xbf16>, vector<32x128xf32> -> vector<32x128xf32>
    %c0_31 = arith.constant 0 : index
    %c0_32 = arith.constant 0 : index
    %36 = vector.load %arg11[%c0_31, %c0_32] : memref<1x128xf32, #tpu.memory_space<vmem>>, vector<1x128xf32>
    %37 = vector.broadcast %36 : vector<1x128xf32> to vector<32x128xf32>
    %38 = arith.addf %35, %37 : vector<32x128xf32>
    %39 = arith.negf %38 : vector<32x128xf32>
    %40 = math.exp %39 : vector<32x128xf32>
    %cst_33 = arith.constant 1.000000e+00 : f32
    %41 = vector.broadcast %cst_33 : f32 to vector<32x128xf32>
    %42 = arith.addf %41, %40 : vector<32x128xf32>
    %43 = arith.divf %41, %42 : vector<32x128xf32>
    %c0_34 = arith.constant 0 : index
    %c0_35 = arith.constant 0 : index
    %44 = vector.load %arg14[%c0_34, %c0_35] : memref<32x128xf32, #tpu.memory_space<vmem>>, vector<32x128xf32>
    tpu.vector_store %arg14[%c0_34, %c0_35], %43 {strides = array<i32>} : memref<32x128xf32, #tpu.memory_space<vmem>>, vector<32x128xf32>,
    return
  }
  func.func @transform_0(%arg0: i32) -> (i32, i32) {
    %c0_i32 = arith.constant 0 : i32
    %c0_i32_0 = arith.constant 0 : i32
    return %arg0, %c0_i32 : i32, i32
  }
  func.func @transform_1(%arg0: i32) -> (i32, i32) {
    %c0_i32 = arith.constant 0 : i32
    %c0_i32_0 = arith.constant 0 : i32
    %c0_i32_1 = arith.constant 0 : i32
    return %c0_i32, %c0_i32_0 : i32, i32
  }
  func.func @transform_2(%arg0: i32) -> (i32, i32) {
    %c0_i32 = arith.constant 0 : i32
    %c0_i32_0 = arith.constant 0 : i32
    %c0_i32_1 = arith.constant 0 : i32
    return %c0_i32, %c0_i32_0 : i32, i32
  }
  func.func @transform_3(%arg0: i32) -> (i32, i32) {
    %c0_i32 = arith.constant 0 : i32
    %c0_i32_0 = arith.constant 0 : i32
    %c0_i32_1 = arith.constant 0 : i32
    return %c0_i32, %c0_i32_0 : i32, i32
  }
  func.func @transform_4(%arg0: i32) -> (i32, i32) {
    %c0_i32 = arith.constant 0 : i32
    %c0_i32_0 = arith.constant 0 : i32
    %c0_i32_1 = arith.constant 0 : i32
    return %c0_i32, %c0_i32_0 : i32, i32
  }
  func.func @transform_5(%arg0: i32) -> (i32, i32) {
    %c0_i32 = arith.constant 0 : i32
    %c0_i32_0 = arith.constant 0 : i32
    %c0_i32_1 = arith.constant 0 : i32
    return %c0_i32, %c0_i32_0 : i32, i32
  }
  func.func @transform_6(%arg0: i32) -> (i32, i32) {
    %c0_i32 = arith.constant 0 : i32
    %c0_i32_0 = arith.constant 0 : i32
    %c0_i32_1 = arith.constant 0 : i32
    return %c0_i32, %c0_i32_0 : i32, i32
  }
  func.func @transform_7(%arg0: i32) -> (i32, i32) {
    %c0_i32 = arith.constant 0 : i32
    %c0_i32_0 = arith.constant 0 : i32
    %c0_i32_1 = arith.constant 0 : i32
    return %c0_i32, %c0_i32_0 : i32, i32
  }
  func.func @transform_8(%arg0: i32) -> (i32, i32) {
    %c0_i32 = arith.constant 0 : i32
    %c0_i32_0 = arith.constant 0 : i32
    %c0_i32_1 = arith.constant 0 : i32
    return %c0_i32, %c0_i32_0 : i32, i32
  }
  func.func @transform_9(%arg0: i32) -> (i32, i32) {
    %c0_i32 = arith.constant 0 : i32
    %c0_i32_0 = arith.constant 0 : i32
    %c0_i32_1 = arith.constant 0 : i32
    return %c0_i32, %c0_i32_0 : i32, i32
  }
  func.func @transform_10(%arg0: i32) -> (i32, i32) {
    %c0_i32 = arith.constant 0 : i32
    %c0_i32_0 = arith.constant 0 : i32
    %c0_i32_1 = arith.constant 0 : i32
    return %c0_i32, %c0_i32_0 : i32, i32
  }
  func.func @transform_11(%arg0: i32) -> (i32, i32) {
    %c0_i32 = arith.constant 0 : i32
    %c0_i32_0 = arith.constant 0 : i32
    return %arg0, %c0_i32 : i32, i32
  }
  func.func @transform_12(%arg0: i32) -> (i32, i32) {
    %c0_i32 = arith.constant 0 : i32
    %c0_i32_0 = arith.constant 0 : i32
    return %arg0, %c0_i32 : i32, i32
  }
  func.func @transform_13(%arg0: i32) -> (i32, i32) {
    %c0_i32 = arith.constant 0 : i32
    %c0_i32_0 = arith.constant 0 : i32
    return %arg0, %c0_i32 : i32, i32
  }
}

module attributes {stable_mosaic.version = 11 : i64} {
  func.func @autoencoder_kernel(%arg0: i32, %arg1: memref<32x128xbf16, #tpu.memory_space<vmem>>, %arg2: memref<128x128xbf16, #tpu.memory_space<vmem>>, %arg3: memref<1x128xf32, #tpu.memory_space<vmem>>, %arg4: memref<128x128xbf16, #tpu.memory_space<vmem>>, %arg5: memref<1x128xf32, #tpu.memory_space<vmem>>, %arg6: memref<128x128xbf16, #tpu.memory_space<vmem>>, %arg7: memref<1x128xf32, #tpu.memory_space<vmem>>, %arg8: memref<128x128xbf16, #tpu.memory_space<vmem>>, %arg9: memref<1x128xf32, #tpu.memory_space<vmem>>, %arg10: memref<128x128xbf16, #tpu.memory_space<vmem>>, %arg11: memref<1x128xf32, #tpu.memory_space<vmem>>, %arg12: memref<32x128xf32, #tpu.memory_space<vmem>>, %arg13: memref<32x128xf32, #tpu.memory_space<vmem>>, %arg14: memref<32x128xf32, #tpu.memory_space<vmem>>) attributes {dimension_semantics = [#tpu.dimension_semantics<parallel>], iteration_bounds = array<i64: 2>, scalar_prefetch = 0 : i64, scratch_operands = 0 : i64, tpu.core_type = #tpu.core_type<tc>, window_params = [{transform_indices = @transform_0, window_bounds = array<i64: 32, 128>}, {pipeline_mode = #tpu.pipeline_mode<synchronous>, transform_indices = @transform_1, window_bounds = array<i64: 128, 128>}, {pipeline_mode = #tpu.pipeline_mode<synchronous>, transform_indices = @transform_2, window_bounds = array<i64: 1, 128>}, {pipeline_mode = #tpu.pipeline_mode<synchronous>, transform_indices = @transform_3, window_bounds = array<i64: 128, 128>}, {pipeline_mode = #tpu.pipeline_mode<synchronous>, transform_indices = @transform_4, window_bounds = array<i64: 1, 128>}, {pipeline_mode = #tpu.pipeline_mode<synchronous>, transform_indices = @transform_5, window_bounds = array<i64: 128, 128>}, {pipeline_mode = #tpu.pipeline_mode<synchronous>, transform_indices = @transform_6, window_bounds = array<i64: 1, 128>}, {pipeline_mode = #tpu.pipeline_mode<synchronous>, transform_indices = @transform_7, window_bounds = array<i64: 128, 128>}, {pipeline_mode = #tpu.pipeline_mode<synchronous>, transform_indices = @transform_8, window_bounds = array<i64: 1, 128>}, {pipeline_mode = #tpu.pipeline_mode<synchronous>, transform_indices = @transform_9, window_bounds = array<i64: 128, 128>}, {pipeline_mode = #tpu.pipeline_mode<synchronous>, transform_indices = @transform_10, window_bounds = array<i64: 1, 128>}, {transform_indices = @transform_11, window_bounds = array<i64: 32, 128>}, {transform_indices = @transform_12, window_bounds = array<i64: 32, 128>}, {transform_indices = @transform_13, window_bounds = array<i64: 32, 128>}]} {
    %c0 = arith.constant 0 : index
    %c0_0 = arith.constant 0 : index
    %0 = vector.load %arg1[%c0, %c0_0] : memref<32x128xbf16, #tpu.memory_space<vmem>>, vector<32x128xbf16>
    %c0_1 = arith.constant 0 : index
    %c0_2 = arith.constant 0 : index
    %1 = vector.load %arg2[%c0_1, %c0_2] : memref<128x128xbf16, #tpu.memory_space<vmem>>, vector<128x128xbf16>
    %cst = arith.constant dense<0.000000e+00> : vector<32x128xf32>
    %2 = tpu.matmul %0, %1, %cst {dimension_numbers = #tpu.dot_dimension_numbers<[1], [0], [0], [1], [0, 0, 1, 1], [], []>} : vector<32x128xbf16>, vector<128x128xbf16>, vector<32x128xf32> -> vector<32x128xf32>
    %c0_3 = arith.constant 0 : index
    %c0_4 = arith.constant 0 : index
    %3 = vector.load %arg3[%c0_3, %c0_4] : memref<1x128xf32, #tpu.memory_space<vmem>>, vector<1x128xf32>
    %4 = vector.broadcast %3 : vector<1x128xf32> to vector<32x128xf32>
    %5 = arith.addf %2, %4 : vector<32x128xf32>
    %cst_5 = arith.constant 0.000000e+00 : f32
    %6 = vector.broadcast %cst_5 : f32 to vector<32x128xf32>
    %7 = arith.maximumf %5, %6 : vector<32x128xf32>
    %8 = arith.truncf %7 : vector<32x128xf32> to vector<32x128xbf16>
    %c0_6 = arith.constant 0 : index
    %c0_7 = arith.constant 0 : index
    %9 = vector.load %arg4[%c0_6, %c0_7] : memref<128x128xbf16, #tpu.memory_space<vmem>>, vector<128x128xbf16>
    %cst_8 = arith.constant dense<0.000000e+00> : vector<32x128xf32>
    %10 = tpu.matmul %8, %9, %cst_8 {dimension_numbers = #tpu.dot_dimension_numbers<[1], [0], [0], [1], [0, 0, 1, 1], [], []>} : vector<32x128xbf16>, vector<128x128xbf16>, vector<32x128xf32> -> vector<32x128xf32>
    %c0_9 = arith.constant 0 : index
    %c0_10 = arith.constant 0 : index
    %11 = vector.load %arg5[%c0_9, %c0_10] : memref<1x128xf32, #tpu.memory_space<vmem>>, vector<1x128xf32>
    %12 = vector.broadcast %11 : vector<1x128xf32> to vector<32x128xf32>
    %13 = arith.addf %10, %12 : vector<32x128xf32>
    %cst_11 = arith.constant 0.000000e+00 : f32
    %14 = vector.broadcast %cst_11 : f32 to vector<32x128xf32>
    %15 = arith.maximumf %13, %14 : vector<32x128xf32>
    %c0_12 = arith.constant 0 : index
    %c0_13 = arith.constant 0 : index
    %16 = vector.load %arg12[%c0_12, %c0_13] : memref<32x128xf32, #tpu.memory_space<vmem>>, vector<32x128xf32>
    tpu.vector_store %arg12[%c0_12, %c0_13], %15 {strides = array<i32>} : memref<32x128xf32, #tpu.memory_space<vmem>>, vector<32x128xf32>,
    %17 = arith.truncf %15 : vector<32x128xf32> to vector<32x128xbf16>
    %c0_14 = arith.constant 0 : index
    %c0_15 = arith.constant 0 : index
    %18 = vector.load %arg6[%c0_14, %c0_15] : memref<128x128xbf16, #tpu.memory_space<vmem>>, vector<128x128xbf16>
    %cst_16 = arith.constant dense<0.000000e+00> : vector<32x128xf32>
    %19 = tpu.matmul %17, %18, %cst_16 {dimension_numbers = #tpu.dot_dimension_numbers<[1], [0], [0], [1], [0, 0, 1, 1], [], []>} : vector<32x128xbf16>, vector<128x128xbf16>, vector<32x128xf32> -> vector<32x128xf32>
    %c0_17 = arith.constant 0 : index
    %c0_18 = arith.constant 0 : index
    %20 = vector.load %arg7[%c0_17, %c0_18] : memref<1x128xf32, #tpu.memory_space<vmem>>, vector<1x128xf32>
    %21 = vector.broadcast %20 : vector<1x128xf32> to vector<32x128xf32>
    %22 = arith.addf %19, %21 : vector<32x128xf32>
    %cst_19 = arith.constant 0.000000e+00 : f32
    %23 = vector.broadcast %cst_19 : f32 to vector<32x128xf32>
    %24 = arith.maximumf %22, %23 : vector<32x128xf32>
    %25 = arith.truncf %24 : vector<32x128xf32> to vector<32x128xbf16>
    %c0_20 = arith.constant 0 : index
    %c0_21 = arith.constant 0 : index
    %26 = vector.load %arg8[%c0_20, %c0_21] : memref<128x128xbf16, #tpu.memory_space<vmem>>, vector<128x128xbf16>
    %cst_22 = arith.constant dense<0.000000e+00> : vector<32x128xf32>
    %27 = tpu.matmul %25, %26, %cst_22 {dimension_numbers = #tpu.dot_dimension_numbers<[1], [0], [0], [1], [0, 0, 1, 1], [], []>} : vector<32x128xbf16>, vector<128x128xbf16>, vector<32x128xf32> -> vector<32x128xf32>
    %c0_23 = arith.constant 0 : index
    %c0_24 = arith.constant 0 : index
    %28 = vector.load %arg9[%c0_23, %c0_24] : memref<1x128xf32, #tpu.memory_space<vmem>>, vector<1x128xf32>
    %29 = vector.broadcast %28 : vector<1x128xf32> to vector<32x128xf32>
    %30 = arith.addf %27, %29 : vector<32x128xf32>
    %cst_25 = arith.constant 0.000000e+00 : f32
    %31 = vector.broadcast %cst_25 : f32 to vector<32x128xf32>
    %32 = arith.maximumf %30, %31 : vector<32x128xf32>
    %c0_26 = arith.constant 0 : index
    %c0_27 = arith.constant 0 : index
    %33 = vector.load %arg13[%c0_26, %c0_27] : memref<32x128xf32, #tpu.memory_space<vmem>>, vector<32x128xf32>
    tpu.vector_store %arg13[%c0_26, %c0_27], %32 {strides = array<i32>} : memref<32x128xf32, #tpu.memory_space<vmem>>, vector<32x128xf32>,
    %c0_28 = arith.constant 0 : index
    %c0_29 = arith.constant 0 : index
    %34 = vector.load %arg10[%c0_28, %c0_29] : memref<128x128xbf16, #tpu.memory_space<vmem>>, vector<128x128xbf16>
    %cst_30 = arith.constant dense<0.000000e+00> : vector<32x128xf32>
    %35 = tpu.matmul %17, %34, %cst_30 {dimension_numbers = #tpu.dot_dimension_numbers<[1], [0], [0], [1], [0, 0, 1, 1], [], []>} : vector<32x128xbf16>, vector<128x128xbf16>, vector<32x128xf32> -> vector<32x128xf32>
    %c0_31 = arith.constant 0 : index
    %c0_32 = arith.constant 0 : index
    %36 = vector.load %arg11[%c0_31, %c0_32] : memref<1x128xf32, #tpu.memory_space<vmem>>, vector<1x128xf32>
    %37 = vector.broadcast %36 : vector<1x128xf32> to vector<32x128xf32>
    %38 = arith.addf %35, %37 : vector<32x128xf32>
    %39 = arith.negf %38 : vector<32x128xf32>
    %40 = math.exp %39 : vector<32x128xf32>
    %cst_33 = arith.constant 1.000000e+00 : f32
    %41 = vector.broadcast %cst_33 : f32 to vector<32x128xf32>
    %42 = arith.addf %41, %40 : vector<32x128xf32>
    %43 = arith.divf %41, %42 : vector<32x128xf32>
    %c0_34 = arith.constant 0 : index
    %c0_35 = arith.constant 0 : index
    %44 = vector.load %arg14[%c0_34, %c0_35] : memref<32x128xf32, #tpu.memory_space<vmem>>, vector<32x128xf32>
    tpu.vector_store %arg14[%c0_34, %c0_35], %43 {strides = array<i32>} : memref<32x128xf32, #tpu.memory_space<vmem>>, vector<32x128xf32>,
    return
  }
  func.func @transform_0(%arg0: i32) -> (i32, i32) {
    %c0_i32 = arith.constant 0 : i32
    %c0_i32_0 = arith.constant 0 : i32
    return %arg0, %c0_i32 : i32, i32
  }
  func.func @transform_1(%arg0: i32) -> (i32, i32) {
    %c0_i32 = arith.constant 0 : i32
    %c0_i32_0 = arith.constant 0 : i32
    %c0_i32_1 = arith.constant 0 : i32
    return %c0_i32, %c0_i32_0 : i32, i32
  }
  func.func @transform_2(%arg0: i32) -> (i32, i32) {
    %c0_i32 = arith.constant 0 : i32
    %c0_i32_0 = arith.constant 0 : i32
    %c0_i32_1 = arith.constant 0 : i32
    return %c0_i32, %c0_i32_0 : i32, i32
  }
  func.func @transform_3(%arg0: i32) -> (i32, i32) {
    %c0_i32 = arith.constant 0 : i32
    %c0_i32_0 = arith.constant 0 : i32
    %c0_i32_1 = arith.constant 0 : i32
    return %c0_i32, %c0_i32_0 : i32, i32
  }
  func.func @transform_4(%arg0: i32) -> (i32, i32) {
    %c0_i32 = arith.constant 0 : i32
    %c0_i32_0 = arith.constant 0 : i32
    %c0_i32_1 = arith.constant 0 : i32
    return %c0_i32, %c0_i32_0 : i32, i32
  }
  func.func @transform_5(%arg0: i32) -> (i32, i32) {
    %c0_i32 = arith.constant 0 : i32
    %c0_i32_0 = arith.constant 0 : i32
    %c0_i32_1 = arith.constant 0 : i32
    return %c0_i32, %c0_i32_0 : i32, i32
  }
  func.func @transform_6(%arg0: i32) -> (i32, i32) {
    %c0_i32 = arith.constant 0 : i32
    %c0_i32_0 = arith.constant 0 : i32
    %c0_i32_1 = arith.constant 0 : i32
    return %c0_i32, %c0_i32_0 : i32, i32
  }
  func.func @transform_7(%arg0: i32) -> (i32, i32) {
    %c0_i32 = arith.constant 0 : i32
    %c0_i32_0 = arith.constant 0 : i32
    %c0_i32_1 = arith.constant 0 : i32
    return %c0_i32, %c0_i32_0 : i32, i32
  }
  func.func @transform_8(%arg0: i32) -> (i32, i32) {
    %c0_i32 = arith.constant 0 : i32
    %c0_i32_0 = arith.constant 0 : i32
    %c0_i32_1 = arith.constant 0 : i32
    return %c0_i32, %c0_i32_0 : i32, i32
  }
  func.func @transform_9(%arg0: i32) -> (i32, i32) {
    %c0_i32 = arith.constant 0 : i32
    %c0_i32_0 = arith.constant 0 : i32
    %c0_i32_1 = arith.constant 0 : i32
    return %c0_i32, %c0_i32_0 : i32, i32
  }
  func.func @transform_10(%arg0: i32) -> (i32, i32) {
    %c0_i32 = arith.constant 0 : i32
    %c0_i32_0 = arith.constant 0 : i32
    %c0_i32_1 = arith.constant 0 : i32
    return %c0_i32, %c0_i32_0 : i32, i32
  }
  func.func @transform_11(%arg0: i32) -> (i32, i32) {
    %c0_i32 = arith.constant 0 : i32
    %c0_i32_0 = arith.constant 0 : i32
    return %arg0, %c0_i32 : i32, i32
  }
  func.func @transform_12(%arg0: i32) -> (i32, i32) {
    %c0_i32 = arith.constant 0 : i32
    %c0_i32_0 = arith.constant 0 : i32
    return %arg0, %c0_i32 : i32, i32
  }
  func.func @transform_13(%arg0: i32) -> (i32, i32) {
    %c0_i32 = arith.constant 0 : i32
    %c0_i32_0 = arith.constant 0 : i32
    return %arg0, %c0_i32 : i32, i32
  }
}

</mosaic_0001>

<llo_original>
// kernel: tpu_custom_call.1
$region0: #{tpu_custom_call.1}
  #allocation0 [shape = 'u32[]', space=smem, size = 0x4, offset = 0x4, fixed_abs, tag = 'smem constant byte address 0x4 - core index']
  #allocation1 [shape = 'u32[144,128]{1,0:T(1,128)}', space=vmem, size = 0x12000, scoped, tag = 'internal scratch']
  %s0 = inlined_call_operand.hbm [shape: bf16[64,128], index: 0, kind: input, shape index: {}]
  %s1 = inlined_call_operand.hbm [shape: bf16[128,128], index: 1, kind: input, shape index: {}]
  %s2 = inlined_call_operand.vmem [shape: f32[1,128], index: 2, kind: input, shape index: {}]
  %s3 = inlined_call_operand.hbm [shape: bf16[128,128], index: 3, kind: input, shape index: {}]
  %s4 = inlined_call_operand.vmem [shape: f32[1,128], index: 4, kind: input, shape index: {}]
  %s5 = inlined_call_operand.hbm [shape: bf16[128,128], index: 5, kind: input, shape index: {}]
  %s6 = inlined_call_operand.vmem [shape: f32[1,128], index: 6, kind: input, shape index: {}]
  %s7 = inlined_call_operand.hbm [shape: bf16[128,128], index: 7, kind: input, shape index: {}]
  %s8 = inlined_call_operand.vmem [shape: f32[1,128], index: 8, kind: input, shape index: {}]
  %s9 = inlined_call_operand.hbm [shape: bf16[128,128], index: 9, kind: input, shape index: {}]
  %s10 = inlined_call_operand.vmem [shape: f32[1,128], index: 10, kind: input, shape index: {}]
  %s11 = inlined_call_operand.hbm [shape: f32[64,128], index: 11, kind: output, shape index: {0}]
  %s12 = inlined_call_operand.hbm [shape: f32[64,128], index: 12, kind: output, shape index: {1}]
  %s13 = inlined_call_operand.hbm [shape: f32[64,128], index: 13, kind: output, shape index: {2}]
  %14 = xla_tuple %s11, %s12, %s13
  %s15 = sld [smem:[#allocation0]]
  $region117: #{tpu_custom_call.1} parent=0
    _
  %s17 = ssub.s32 1, %s15
  %s18 = scalar_select 0, %s17, %s15
  $region1: #{tpu_custom_call.1} parent=0
    #allocation2 [shape = 'u8[16384]{0}', space=vmem, size = 0x4000, scoped, tag = 'input window, operand 0']
    #allocation3 [shape = 's32[2]{0}', space=sflag, size = 0x8, scoped, tag = 'scoped memory for tpu_custom_call.1']
    #allocation4 [shape = 's32[2]{0}', space=sflag, size = 0x8, scoped, tag = 'scoped memory for tpu_custom_call.1']
    #allocation5 [shape = 'u8[32768]{0}', space=vmem, size = 0x8000, scoped, tag = 'input window, operand 1, single buffered']
    #allocation6 [shape = 's32[1]{0}', space=sflag, size = 0x4, scoped, tag = 'scoped memory for tpu_custom_call.1']
    #allocation7 [shape = 'u8[32768]{0}', space=vmem, size = 0x8000, scoped, tag = 'input window, operand 3, single buffered']
    #allocation8 [shape = 'u8[32768]{0}', space=vmem, size = 0x8000, scoped, tag = 'input window, operand 5, single buffered']
    #allocation9 [shape = 's32[1]{0}', space=sflag, size = 0x4, scoped, tag = 'scoped memory for tpu_custom_call.1']
    #allocation10 [shape = 'u8[32768]{0}', space=vmem, size = 0x8000, scoped, tag = 'input window, operand 7, single buffered']
    #allocation11 [shape = 'u8[32768]{0}', space=vmem, size = 0x8000, scoped, tag = 'input window, operand 9, single buffered']
    #allocation12 [shape = 's32[1]{0}', space=sflag, size = 0x4, scoped, tag = 'scoped memory for tpu_custom_call.1']
    #allocation13 [shape = 'u8[32768]{0}', space=vmem, size = 0x8000, scoped, tag = 'output window, operand 0']
    #allocation14 [shape = 'u8[32768]{0}', space=vmem, size = 0x8000, scoped, tag = 'output window, operand 1']
    #allocation15 [shape = 's32[2]{0}', space=sflag, size = 0x8, scoped, tag = 'scoped memory for tpu_custom_call.1']
    #allocation16 [shape = 'u8[32768]{0}', space=vmem, size = 0x8000, scoped, tag = 'output window, operand 2']
    %19 = vsyncpa [#allocation3], 0
    %s20 = scalar_lea.sflag [#allocation3], 1
    %21 = vsyncpa %s20, 0
    %22 = vsyncpa [#allocation6], 0
    %23 = vsyncpa [#allocation9], 0
    %24 = vsyncpa [#allocation12], 0
    %25 = vsyncpa [#allocation4], 0
    %s26 = scalar_lea.sflag [#allocation4], 1
    %27 = vsyncpa %s26, 0
    %28 = vsyncpa [#allocation15], 0
    %s29 = scalar_lea.sflag [#allocation15], 1
    %30 = vsyncpa %s29, 0
    loop: start=0, step=1, limit=4
    $region2: #{tpu_custom_call.1} parent=1 // loop_pre_header
      _
    $region3: #{tpu_custom_call.1} parent=1 // loop_header
      %s32 = sphi 0, %s36
      %p33 = scmp.ge.s32.totalorder %s32, 4
      %s42 = sphi 0, %s44
      %s45 = sphi 0, %s42
      %s46 = sphi 0, %s45
      %s62 = sphi 0, %s46
      %s66 = sphi 0, %s66
      %s68 = sphi 0, %s66
      %s69 = sphi 0, %s68
      %s83 = sphi 0, %s69
      %s87 = sphi 0, %s87
      %s89 = sphi 0, %s87
      %s90 = sphi 0, %s89
      %s104 = sphi 0, %s90
      %s108 = sphi 0, %s108
      %s110 = sphi 0, %s108
      %s111 = sphi 0, %s110
      %s125 = sphi 0, %s111
      %s129 = sphi 0, %s129
      %s131 = sphi 0, %s129
      %s132 = sphi 0, %s131
      %s146 = sphi 0, %s132
      %s150 = sphi 0, %s150
      %s152 = sphi 0, %s150
      %s153 = sphi 0, %s152
      %s167 = sphi 0, %s153
      %s171 = sphi 0, %s171
      %s173 = sphi 0, %s171
      %s174 = sphi 0, %s173
      %s188 = sphi 0, %s174
      %s192 = sphi 0, %s192
      %s194 = sphi 0, %s192
      %s195 = sphi 0, %s194
      %s209 = sphi 0, %s195
      %s213 = sphi 0, %s213
      %s215 = sphi 0, %s213
      %s216 = sphi 0, %s215
      %s230 = sphi 0, %s216
      %s234 = sphi 0, %s234
      %s236 = sphi 0, %s234
      %s237 = sphi 0, %s236
      %s251 = sphi 0, %s237
      %s255 = sphi 0, %s255
      %s257 = sphi 0, %s255
      %s258 = sphi 0, %s257
      %s272 = sphi 0, %s258
      %s278 = sphi 0, %s280
      %s281 = sphi 0, %s278
      %s282 = sphi 0, %s281
      %s298 = sphi 0, %s282
      %s304 = sphi 0, %s306
      %s307 = sphi 0, %s304
      %s308 = sphi 0, %s307
      %s324 = sphi 0, %s308
      %s330 = sphi 0, %s332
      %s333 = sphi 0, %s330
      %s334 = sphi 0, %s333
      %s350 = sphi 0, %s334
    $region4: #{tpu_custom_call.1} parent=1 // loop_header_branch
      %35 = sbr.rel (%p33) target = $region8
    $region5: #{tpu_custom_call.1} parent=1 // loop_body
      %s37 = ssub.s32 %s32, 1
      %s38 = ssub.s32 %s32, 2
      %s39 = sadd.s32 %s32, 1
      %s40 = ssub.s32 %s32, %s39
      %p41 = scmp.eq.s32.totalorder %s40, 0
      %s43 = sadd.s32 %s42, 1
      %s44 = scalar_select %p41, %s42, %s43
      %p47 = pneg %p41
      %p48 = scmp.eq.s32.totalorder %s32, 1
      %p49 = por %p47, %p48
      %p50 = scmp.ne.s32.totalorder %s42, %s45
      %p51 = scmp.eq.s32.totalorder %s32, 0
      %p52 = por %p50, %p51
      %p53 = scmp.ne.s32.totalorder %s42, %s45
      %p54 = scmp.eq.s32.totalorder %s37, 1
      %p55 = por %p53, %p54
      %p56 = scmp.ne.s32.totalorder %s45, %s46
      %p57 = scmp.eq.s32.totalorder %s37, 0
      %p58 = por %p56, %p57
      %p59 = scmp.ne.s32.totalorder %s45, %s46
      %p60 = scmp.eq.s32.totalorder %s38, 1
      %p61 = por %p59, %p60
      %p63 = scmp.ne.s32.totalorder %s46, %s62
      %p64 = scmp.eq.s32.totalorder %s38, 0
      %p65 = por %p63, %p64
      %s67 = sadd.s32 %s66, 1
      %p70 = scmp.eq.s32.totalorder %s32, 1
      %p71 = scmp.ne.s32.totalorder %s66, %s68
      %p72 = scmp.eq.s32.totalorder %s32, 0
      %p73 = por %p71, %p72
      %p74 = scmp.ne.s32.totalorder %s66, %s68
      %p75 = scmp.eq.s32.totalorder %s37, 1
      %p76 = por %p74, %p75
      %p77 = scmp.ne.s32.totalorder %s68, %s69
      %p78 = scmp.eq.s32.totalorder %s37, 0
      %p79 = por %p77, %p78
      %p80 = scmp.ne.s32.totalorder %s68, %s69
      %p81 = scmp.eq.s32.totalorder %s38, 1
      %p82 = por %p80, %p81
      %p84 = scmp.ne.s32.totalorder %s69, %s83
      %p85 = scmp.eq.s32.totalorder %s38, 0
      %p86 = por %p84, %p85
      %s88 = sadd.s32 %s87, 1
      %p91 = scmp.eq.s32.totalorder %s32, 1
      %p92 = scmp.ne.s32.totalorder %s87, %s89
      %p93 = scmp.eq.s32.totalorder %s32, 0
      %p94 = por %p92, %p93
      %p95 = scmp.ne.s32.totalorder %s87, %s89
      %p96 = scmp.eq.s32.totalorder %s37, 1
      %p97 = por %p95, %p96
      %p98 = scmp.ne.s32.totalorder %s89, %s90
      %p99 = scmp.eq.s32.totalorder %s37, 0
      %p100 = por %p98, %p99
      %p101 = scmp.ne.s32.totalorder %s89, %s90
      %p102 = scmp.eq.s32.totalorder %s38, 1
      %p103 = por %p101, %p102
      %p105 = scmp.ne.s32.totalorder %s90, %s104
      %p106 = scmp.eq.s32.totalorder %s38, 0
      %p107 = por %p105, %p106
      %s109 = sadd.s32 %s108, 1
      %p112 = scmp.eq.s32.totalorder %s32, 1
      %p113 = scmp.ne.s32.totalorder %s108, %s110
      %p114 = scmp.eq.s32.totalorder %s32, 0
      %p115 = por %p113, %p114
      %p116 = scmp.ne.s32.totalorder %s108, %s110
      %p117 = scmp.eq.s32.totalorder %s37, 1
      %p118 = por %p116, %p117
      %p119 = scmp.ne.s32.totalorder %s110, %s111
      %p120 = scmp.eq.s32.totalorder %s37, 0
      %p121 = por %p119, %p120
      %p122 = scmp.ne.s32.totalorder %s110, %s111
      %p123 = scmp.eq.s32.totalorder %s38, 1
      %p124 = por %p122, %p123
      %p126 = scmp.ne.s32.totalorder %s111, %s125
      %p127 = scmp.eq.s32.totalorder %s38, 0
      %p128 = por %p126, %p127
      %s130 = sadd.s32 %s129, 1
      %p133 = scmp.eq.s32.totalorder %s32, 1
      %p134 = scmp.ne.s32.totalorder %s129, %s131
      %p135 = scmp.eq.s32.totalorder %s32, 0
      %p136 = por %p134, %p135
      %p137 = scmp.ne.s32.totalorder %s129, %s131
      %p138 = scmp.eq.s32.totalorder %s37, 1
      %p139 = por %p137, %p138
      %p140 = scmp.ne.s32.totalorder %s131, %s132
      %p141 = scmp.eq.s32.totalorder %s37, 0
      %p142 = por %p140, %p141
      %p143 = scmp.ne.s32.totalorder %s131, %s132
      %p144 = scmp.eq.s32.totalorder %s38, 1
      %p145 = por %p143, %p144
      %p147 = scmp.ne.s32.totalorder %s132, %s146
      %p148 = scmp.eq.s32.totalorder %s38, 0
      %p149 = por %p147, %p148
      %s151 = sadd.s32 %s150, 1
      %p154 = scmp.eq.s32.totalorder %s32, 1
      %p155 = scmp.ne.s32.totalorder %s150, %s152
      %p156 = scmp.eq.s32.totalorder %s32, 0
      %p157 = por %p155, %p156
      %p158 = scmp.ne.s32.totalorder %s150, %s152
      %p159 = scmp.eq.s32.totalorder %s37, 1
      %p160 = por %p158, %p159
      %p161 = scmp.ne.s32.totalorder %s152, %s153
      %p162 = scmp.eq.s32.totalorder %s37, 0
      %p163 = por %p161, %p162
      %p164 = scmp.ne.s32.totalorder %s152, %s153
      %p165 = scmp.eq.s32.totalorder %s38, 1
      %p166 = por %p164, %p165
      %p168 = scmp.ne.s32.totalorder %s153, %s167
      %p169 = scmp.eq.s32.totalorder %s38, 0
      %p170 = por %p168, %p169
      %s172 = sadd.s32 %s171, 1
      %p175 = scmp.eq.s32.totalorder %s32, 1
      %p176 = scmp.ne.s32.totalorder %s171, %s173
      %p177 = scmp.eq.s32.totalorder %s32, 0
      %p178 = por %p176, %p177
      %p179 = scmp.ne.s32.totalorder %s171, %s173
      %p180 = scmp.eq.s32.totalorder %s37, 1
      %p181 = por %p179, %p180
      %p182 = scmp.ne.s32.totalorder %s173, %s174
      %p183 = scmp.eq.s32.totalorder %s37, 0
      %p184 = por %p182, %p183
      %p185 = scmp.ne.s32.totalorder %s173, %s174
      %p186 = scmp.eq.s32.totalorder %s38, 1
      %p187 = por %p185, %p186
      %p189 = scmp.ne.s32.totalorder %s174, %s188
      %p190 = scmp.eq.s32.totalorder %s38, 0
      %p191 = por %p189, %p190
      %s193 = sadd.s32 %s192, 1
      %p196 = scmp.eq.s32.totalorder %s32, 1
      %p197 = scmp.ne.s32.totalorder %s192, %s194
      %p198 = scmp.eq.s32.totalorder %s32, 0
      %p199 = por %p197, %p198
      %p200 = scmp.ne.s32.totalorder %s192, %s194
      %p201 = scmp.eq.s32.totalorder %s37, 1
      %p202 = por %p200, %p201
      %p203 = scmp.ne.s32.totalorder %s194, %s195
      %p204 = scmp.eq.s32.totalorder %s37, 0
      %p205 = por %p203, %p204
      %p206 = scmp.ne.s32.totalorder %s194, %s195
      %p207 = scmp.eq.s32.totalorder %s38, 1
      %p208 = por %p206, %p207
      %p210 = scmp.ne.s32.totalorder %s195, %s209
      %p211 = scmp.eq.s32.totalorder %s38, 0
      %p212 = por %p210, %p211
      %s214 = sadd.s32 %s213, 1
      %p217 = scmp.eq.s32.totalorder %s32, 1
      %p218 = scmp.ne.s32.totalorder %s213, %s215
      %p219 = scmp.eq.s32.totalorder %s32, 0
      %p220 = por %p218, %p219
      %p221 = scmp.ne.s32.totalorder %s213, %s215
      %p222 = scmp.eq.s32.totalorder %s37, 1
      %p223 = por %p221, %p222
      %p224 = scmp.ne.s32.totalorder %s215, %s216
      %p225 = scmp.eq.s32.totalorder %s37, 0
      %p226 = por %p224, %p225
      %p227 = scmp.ne.s32.totalorder %s215, %s216
      %p228 = scmp.eq.s32.totalorder %s38, 1
      %p229 = por %p227, %p228
      %p231 = scmp.ne.s32.totalorder %s216, %s230
      %p232 = scmp.eq.s32.totalorder %s38, 0
      %p233 = por %p231, %p232
      %s235 = sadd.s32 %s234, 1
      %p238 = scmp.eq.s32.totalorder %s32, 1
      %p239 = scmp.ne.s32.totalorder %s234, %s236
      %p240 = scmp.eq.s32.totalorder %s32, 0
      %p241 = por %p239, %p240
      %p242 = scmp.ne.s32.totalorder %s234, %s236
      %p243 = scmp.eq.s32.totalorder %s37, 1
      %p244 = por %p242, %p243
      %p245 = scmp.ne.s32.totalorder %s236, %s237
      %p246 = scmp.eq.s32.totalorder %s37, 0
      %p247 = por %p245, %p246
      %p248 = scmp.ne.s32.totalorder %s236, %s237
      %p249 = scmp.eq.s32.totalorder %s38, 1
      %p250 = por %p248, %p249
      %p252 = scmp.ne.s32.totalorder %s237, %s251
      %p253 = scmp.eq.s32.totalorder %s38, 0
      %p254 = por %p252, %p253
      %s256 = sadd.s32 %s255, 1
      %p259 = scmp.eq.s32.totalorder %s32, 1
      %p260 = scmp.ne.s32.totalorder %s255, %s257
      %p261 = scmp.eq.s32.totalorder %s32, 0
      %p262 = por %p260, %p261
      %p263 = scmp.ne.s32.totalorder %s255, %s257
      %p264 = scmp.eq.s32.totalorder %s37, 1
      %p265 = por %p263, %p264
      %p266 = scmp.ne.s32.totalorder %s257, %s258
      %p267 = scmp.eq.s32.totalorder %s37, 0
      %p268 = por %p266, %p267
      %p269 = scmp.ne.s32.totalorder %s257, %s258
      %p270 = scmp.eq.s32.totalorder %s38, 1
      %p271 = por %p269, %p270
      %p273 = scmp.ne.s32.totalorder %s258, %s272
      %p274 = scmp.eq.s32.totalorder %s38, 0
      %p275 = por %p273, %p274
      %s276 = ssub.s32 %s32, %s39
      %p277 = scmp.eq.s32.totalorder %s276, 0
      %s279 = sadd.s32 %s278, 1
      %s280 = scalar_select %p277, %s278, %s279
      %p283 = pneg %p277
      %p284 = scmp.eq.s32.totalorder %s32, 1
      %p285 = por %p283, %p284
      %p286 = scmp.ne.s32.totalorder %s278, %s281
      %p287 = scmp.eq.s32.totalorder %s32, 0
      %p288 = por %p286, %p287
      %p289 = scmp.ne.s32.totalorder %s278, %s281
      %p290 = scmp.eq.s32.totalorder %s37, 1
      %p291 = por %p289, %p290
      %p292 = scmp.ne.s32.totalorder %s281, %s282
      %p293 = scmp.eq.s32.totalorder %s37, 0
      %p294 = por %p292, %p293
      %p295 = scmp.ne.s32.totalorder %s281, %s282
      %p296 = scmp.eq.s32.totalorder %s38, 1
      %p297 = por %p295, %p296
      %p299 = scmp.ne.s32.totalorder %s282, %s298
      %p300 = scmp.eq.s32.totalorder %s38, 0
      %p301 = por %p299, %p300
      %s302 = ssub.s32 %s32, %s39
      %p303 = scmp.eq.s32.totalorder %s302, 0
      %s305 = sadd.s32 %s304, 1
      %s306 = scalar_select %p303, %s304, %s305
      %p309 = pneg %p303
      %p310 = scmp.eq.s32.totalorder %s32, 1
      %p311 = por %p309, %p310
      %p312 = scmp.ne.s32.totalorder %s304, %s307
      %p313 = scmp.eq.s32.totalorder %s32, 0
      %p314 = por %p312, %p313
      %p315 = scmp.ne.s32.totalorder %s304, %s307
      %p316 = scmp.eq.s32.totalorder %s37, 1
      %p317 = por %p315, %p316
      %p318 = scmp.ne.s32.totalorder %s307, %s308
      %p319 = scmp.eq.s32.totalorder %s37, 0
      %p320 = por %p318, %p319
      %p321 = scmp.ne.s32.totalorder %s307, %s308
      %p322 = scmp.eq.s32.totalorder %s38, 1
      %p323 = por %p321, %p322
      %p325 = scmp.ne.s32.totalorder %s308, %s324
      %p326 = scmp.eq.s32.totalorder %s38, 0
      %p327 = por %p325, %p326
      %s328 = ssub.s32 %s32, %s39
      %p329 = scmp.eq.s32.totalorder %s328, 0
      %s331 = sadd.s32 %s330, 1
      %s332 = scalar_select %p329, %s330, %s331
      %p335 = pneg %p329
      %p336 = scmp.eq.s32.totalorder %s32, 1
      %p337 = por %p335, %p336
      %p338 = scmp.ne.s32.totalorder %s330, %s333
      %p339 = scmp.eq.s32.totalorder %s32, 0
      %p340 = por %p338, %p339
      %p341 = scmp.ne.s32.totalorder %s330, %s333
      %p342 = scmp.eq.s32.totalorder %s37, 1
      %p343 = por %p341, %p342
      %p344 = scmp.ne.s32.totalorder %s333, %s334
      %p345 = scmp.eq.s32.totalorder %s37, 0
      %p346 = por %p344, %p345
      %p347 = scmp.ne.s32.totalorder %s333, %s334
      %p348 = scmp.eq.s32.totalorder %s38, 1
      %p349 = por %p347, %p348
      %p351 = scmp.ne.s32.totalorder %s334, %s350
      %p352 = scmp.eq.s32.totalorder %s38, 0
      %p353 = por %p351, %p352
      %p354 = scmp.le.s32.totalorder 1, %s32
      %p355 = scmp.lt.s32.totalorder %s32, 3
      %p356 = pnand %p354, %p355
      %p357 = pneg %p356
      // Predicated region
      $region9: #{tpu_custom_call.1} parent=5 // pred_check
        _
      $region10: #{tpu_custom_call.1} parent=5 // pred_check_branch
        %359 = sbr.rel (%p356) target = $region12
      $region11: #{tpu_custom_call.1} parent=5 // pred_region
        %s360 = ssub.s32 %s32, 1
        // Predicated region
        $region13: #{tpu_custom_call.1} parent=11 // pred_check
          %p361 = pneg %p79
        $region14: #{tpu_custom_call.1} parent=11 // pred_check_branch
          %363 = sbr.rel (%p361) target = $region16
        $region15: #{tpu_custom_call.1} parent=11 // pred_region
          %s365 = ssub.s32 1024, 1024
          %366 = vsyncadd [#allocation6], %s365
          %s367 = sshll.u32 [#allocation5], 4
          %s368 = int_to_ptr.vmem [resolvable:$true] %s367
          %373 = dma.hbm_to_vmem [thread:$0]  %s1, 1024, %s368, [#allocation6], 64, 64, 4
        $region16: #{tpu_custom_call.1} parent=11 // pred_fallthru
          _
        // Predicated region
        $region17: #{tpu_custom_call.1} parent=11 // pred_check
          %p374 = pneg %p100
        $region18: #{tpu_custom_call.1} parent=11 // pred_check_branch
          %376 = sbr.rel (%p374) target = $region20
        $region19: #{tpu_custom_call.1} parent=11 // pred_region
          _
        $region20: #{tpu_custom_call.1} parent=11 // pred_fallthru
          _
        // Predicated region
        $region21: #{tpu_custom_call.1} parent=11 // pred_check
          %p377 = pneg %p121
        $region22: #{tpu_custom_call.1} parent=11 // pred_check_branch
          %379 = sbr.rel (%p377) target = $region24
        $region23: #{tpu_custom_call.1} parent=11 // pred_region
          %s381 = ssub.s32 1024, 1024
          %382 = vsyncadd [#allocation6], %s381
          %s383 = sshll.u32 [#allocation7], 4
          %s384 = int_to_ptr.vmem [resolvable:$true] %s383
          %389 = dma.hbm_to_vmem [thread:$0]  %s3, 1024, %s384, [#allocation6], 64, 64, 4
        $region24: #{tpu_custom_call.1} parent=11 // pred_fallthru
          _
        // Predicated region
        $region25: #{tpu_custom_call.1} parent=11 // pred_check
          %p390 = pneg %p142
        $region26: #{tpu_custom_call.1} parent=11 // pred_check_branch
          %392 = sbr.rel (%p390) target = $region28
        $region27: #{tpu_custom_call.1} parent=11 // pred_region
          _
        $region28: #{tpu_custom_call.1} parent=11 // pred_fallthru
          _
        // Predicated region
        $region29: #{tpu_custom_call.1} parent=11 // pred_check
          %p393 = pneg %p163
        $region30: #{tpu_custom_call.1} parent=11 // pred_check_branch
          %395 = sbr.rel (%p393) target = $region32
        $region31: #{tpu_custom_call.1} parent=11 // pred_region
          %s397 = ssub.s32 1024, 1024
          %398 = vsyncadd [#allocation9], %s397
          %s399 = sshll.u32 [#allocation8], 4
          %s400 = int_to_ptr.vmem [resolvable:$true] %s399
          %405 = dma.hbm_to_vmem [thread:$0]  %s5, 1024, %s400, [#allocation9], 64, 64, 4
        $region32: #{tpu_custom_call.1} parent=11 // pred_fallthru
          _
        // Predicated region
        $region33: #{tpu_custom_call.1} parent=11 // pred_check
          %p406 = pneg %p184
        $region34: #{tpu_custom_call.1} parent=11 // pred_check_branch
          %408 = sbr.rel (%p406) target = $region36
        $region35: #{tpu_custom_call.1} parent=11 // pred_region
          _
        $region36: #{tpu_custom_call.1} parent=11 // pred_fallthru
          _
        // Predicated region
        $region37: #{tpu_custom_call.1} parent=11 // pred_check
          %p409 = pneg %p205
        $region38: #{tpu_custom_call.1} parent=11 // pred_check_branch
          %411 = sbr.rel (%p409) target = $region40
        $region39: #{tpu_custom_call.1} parent=11 // pred_region
          %s413 = ssub.s32 1024, 1024
          %414 = vsyncadd [#allocation9], %s413
          %s415 = sshll.u32 [#allocation10], 4
          %s416 = int_to_ptr.vmem [resolvable:$true] %s415
          %421 = dma.hbm_to_vmem [thread:$0]  %s7, 1024, %s416, [#allocation9], 64, 64, 4
        $region40: #{tpu_custom_call.1} parent=11 // pred_fallthru
          _
        // Predicated region
        $region41: #{tpu_custom_call.1} parent=11 // pred_check
          %p422 = pneg %p226
        $region42: #{tpu_custom_call.1} parent=11 // pred_check_branch
          %424 = sbr.rel (%p422) target = $region44
        $region43: #{tpu_custom_call.1} parent=11 // pred_region
          _
        $region44: #{tpu_custom_call.1} parent=11 // pred_fallthru
          _
        // Predicated region
        $region45: #{tpu_custom_call.1} parent=11 // pred_check
          %p425 = pneg %p247
        $region46: #{tpu_custom_call.1} parent=11 // pred_check_branch
          %427 = sbr.rel (%p425) target = $region48
        $region47: #{tpu_custom_call.1} parent=11 // pred_region
          %s429 = ssub.s32 1024, 1024
          %430 = vsyncadd [#allocation12], %s429
          %s431 = sshll.u32 [#allocation11], 4
          %s432 = int_to_ptr.vmem [resolvable:$true] %s431
          %437 = dma.hbm_to_vmem [thread:$0]  %s9, 1024, %s432, [#allocation12], 64, 64, 4
        $region48: #{tpu_custom_call.1} parent=11 // pred_fallthru
          _
        // Predicated region
        $region49: #{tpu_custom_call.1} parent=11 // pred_check
          %p438 = pneg %p268
        $region50: #{tpu_custom_call.1} parent=11 // pred_check_branch
          %440 = sbr.rel (%p438) target = $region52
        $region51: #{tpu_custom_call.1} parent=11 // pred_region
          _
        $region52: #{tpu_custom_call.1} parent=11 // pred_fallthru
          _
      $region12: #{tpu_custom_call.1} parent=5 // pred_fallthru
        _
      %p441 = scmp.lt.s32.totalorder %s32, 2
      // Predicated region
      $region53: #{tpu_custom_call.1} parent=5 // pred_check
        %p442 = pneg %p441
      $region54: #{tpu_custom_call.1} parent=5 // pred_check_branch
        %444 = sbr.rel (%p442) target = $region56
      $region55: #{tpu_custom_call.1} parent=5 // pred_region
        // Predicated region
        $region57: #{tpu_custom_call.1} parent=55 // pred_check
          %p445 = pneg %p52
        $region58: #{tpu_custom_call.1} parent=55 // pred_check_branch
          %447 = sbr.rel (%p445) target = $region60
        $region59: #{tpu_custom_call.1} parent=55 // pred_region
          %s448 = sand.u32 %s42, 1
          %s449 = scalar_lea.sflag [#allocation3], %s448
          %s450 = sand.u32 %s42, 1
          %s451 = smul.addr %s450, 16
          %s452 = scalar_lea.vmem [#allocation2], %s451
          %s453 = smul.u32 4, %s32
          %s455 = ssub.s32 256, 256
          %456 = vsyncadd %s449, %s455
          %s457 = smul.addr %s453, 64
          %s458 = scalar_lea.hbm %s0, %s457
          %s459 = sshll.u32 %s452, 4
          %s460 = int_to_ptr.vmem [resolvable:$true] %s459
          %465 = dma.hbm_to_vmem [thread:$0]  %s458, 256, %s460, %s449, 64, 64, 4
        $region60: #{tpu_custom_call.1} parent=55 // pred_fallthru
          _
      $region56: #{tpu_custom_call.1} parent=5 // pred_fallthru
        _
      %p466 = scmp.le.s32.totalorder 1, %s32
      %p467 = scmp.lt.s32.totalorder %s32, 3
      %p468 = pnand %p466, %p467
      %p469 = pneg %p468
      // Predicated region
      $region61: #{tpu_custom_call.1} parent=5 // pred_check
        _
      $region62: #{tpu_custom_call.1} parent=5 // pred_check_branch
        %471 = sbr.rel (%p468) target = $region64
      $region63: #{tpu_custom_call.1} parent=5 // pred_region
        %s472 = ssub.s32 %s32, 1
        %s473 = sand.u32 %s45, 1
        %s474 = scalar_lea.sflag [#allocation3], %s473
        %s475 = sand.u32 %s45, 1
        %s476 = smul.addr %s475, 16
        %s477 = scalar_lea.vmem [#allocation2], %s476
        // Predicated region
        $region65: #{tpu_custom_call.1} parent=63 // pred_check
          %p478 = pneg %p58
        $region66: #{tpu_custom_call.1} parent=63 // pred_check_branch
          %480 = sbr.rel (%p478) target = $region68
        $region67: #{tpu_custom_call.1} parent=63 // pred_region
          %481 = dma.done %s474, 256
        $region68: #{tpu_custom_call.1} parent=63 // pred_fallthru
          _
        // Predicated region
        $region69: #{tpu_custom_call.1} parent=63 // pred_check
          %p482 = pneg %p79
        $region70: #{tpu_custom_call.1} parent=63 // pred_check_branch
          %484 = sbr.rel (%p482) target = $region72
        $region71: #{tpu_custom_call.1} parent=63 // pred_region
          %485 = dma.done [#allocation6], 1024
        $region72: #{tpu_custom_call.1} parent=63 // pred_fallthru
          _
        // Predicated region
        $region73: #{tpu_custom_call.1} parent=63 // pred_check
          %p486 = pneg %p121
        $region74: #{tpu_custom_call.1} parent=63 // pred_check_branch
          %488 = sbr.rel (%p486) target = $region76
        $region75: #{tpu_custom_call.1} parent=63 // pred_region
          %489 = dma.done [#allocation6], 1024
        $region76: #{tpu_custom_call.1} parent=63 // pred_fallthru
          _
        // Predicated region
        $region77: #{tpu_custom_call.1} parent=63 // pred_check
          %p490 = pneg %p163
        $region78: #{tpu_custom_call.1} parent=63 // pred_check_branch
          %492 = sbr.rel (%p490) target = $region80
        $region79: #{tpu_custom_call.1} parent=63 // pred_region
          %493 = dma.done [#allocation9], 1024
        $region80: #{tpu_custom_call.1} parent=63 // pred_fallthru
          _
        // Predicated region
        $region81: #{tpu_custom_call.1} parent=63 // pred_check
          %p494 = pneg %p205
        $region82: #{tpu_custom_call.1} parent=63 // pred_check_branch
          %496 = sbr.rel (%p494) target = $region84
        $region83: #{tpu_custom_call.1} parent=63 // pred_region
          %497 = dma.done [#allocation9], 1024
        $region84: #{tpu_custom_call.1} parent=63 // pred_fallthru
          _
        // Predicated region
        $region85: #{tpu_custom_call.1} parent=63 // pred_check
          %p498 = pneg %p247
        $region86: #{tpu_custom_call.1} parent=63 // pred_check_branch
          %500 = sbr.rel (%p498) target = $region88
        $region87: #{tpu_custom_call.1} parent=63 // pred_region
          %501 = dma.done [#allocation12], 1024
        $region88: #{tpu_custom_call.1} parent=63 // pred_fallthru
          _
        %s502 = sand.u32 %s45, 1
        %s503 = scalar_lea.sflag [#allocation3], %s502
        %s504 = sand.u32 %s45, 1
        %s505 = smul.addr %s504, 16
        %s506 = scalar_lea.vmem [#allocation2], %s505
        %p507 = pneg %p58
        %p508 = pneg %p55
        %p509 = pneg %p79
        %p510 = pneg %p76
        %p511 = pneg %p100
        %p512 = pneg %p97
        %p513 = pneg %p121
        %p514 = pneg %p118
        %p515 = pneg %p142
        %p516 = pneg %p139
        %p517 = pneg %p163
        %p518 = pneg %p160
        %p519 = pneg %p184
        %p520 = pneg %p181
        %p521 = pneg %p205
        %p522 = pneg %p202
        %p523 = pneg %p226
        %p524 = pneg %p223
        %p525 = pneg %p247
        %p526 = pneg %p244
        %p527 = pneg %p268
        %p528 = pneg %p265
        %p529 = pneg %p294
        %p530 = pneg %p291
        %s531 = sand.u32 %s281, 1
        %s532 = scalar_lea.sflag [#allocation4], %s531
        %s533 = sand.u32 %s281, 1
        %s534 = smul.addr %s533, 32
        %s535 = scalar_lea.vmem [#allocation13], %s534
        %p536 = pneg %p320
        %p537 = pneg %p317
        %s538 = sand.u32 %s37, 1
        %s539 = scalar_lea.sflag [#allocation15], %s538
        %s540 = sand.u32 %s307, 1
        %s541 = smul.addr %s540, 32
        %s542 = scalar_lea.vmem [#allocation14], %s541
        %p543 = pneg %p346
        %p544 = pneg %p343
        %s545 = sand.u32 %s37, 1
        %s546 = scalar_lea.sflag [#allocation15], %s545
        %s547 = sand.u32 %s333, 1
        %s548 = smul.addr %s547, 32
        %s549 = scalar_lea.vmem [#allocation16], %s548
        %s550 = smul.u32 4, %s37
        %s551 = smul.u32 4, %s37
        %s552 = smul.u32 4, %s37
        %s553 = smul.u32 4, %s37
        %v555 = vld [vmem:[%s477] sm:$0xf]
        %v556 = vld [vmem:[%s477 + $0x4] sm:$0xf]
        %v557 = vld [vmem:[%s477 + $0x8] sm:$0xf]
        %v558 = vld [vmem:[%s477 + $0xc] sm:$0xf]
        %v559 = vld [vmem:[#allocation5] sm:$0xf]
        %v560 = vld [vmem:[#allocation5 + $0x4] sm:$0xf]
        %v561 = vld [vmem:[#allocation5 + $0x8] sm:$0xf]
        %v562 = vld [vmem:[#allocation5 + $0xc] sm:$0xf]
        %v563 = vld [vmem:[#allocation5 + $0x10] sm:$0xf]
        %v564 = vld [vmem:[#allocation5 + $0x14] sm:$0xf]
        %v565 = vld [vmem:[#allocation5 + $0x18] sm:$0xf]
        %v566 = vld [vmem:[#allocation5 + $0x1c] sm:$0xf]
        %v567 = vld [vmem:[#allocation5 + $0x20] sm:$0xf]
        %v568 = vld [vmem:[#allocation5 + $0x24] sm:$0xf]
        %v569 = vld [vmem:[#allocation5 + $0x28] sm:$0xf]
        %v570 = vld [vmem:[#allocation5 + $0x2c] sm:$0xf]
        %v571 = vld [vmem:[#allocation5 + $0x30] sm:$0xf]
        %v572 = vld [vmem:[#allocation5 + $0x34] sm:$0xf]
        %v573 = vld [vmem:[#allocation5 + $0x38] sm:$0xf]
        %v574 = vld [vmem:[#allocation5 + $0x3c] sm:$0xf]
        %v575 = vld [vmem:[%s2] sm:$0x1]
        %v577 = vlaneseq
        %v578 = vshrl.u32 %v577, 7
        %v579 = vsub.s32 0, %v578
        %v580 = vrot.slane %v575, %v579
        %v586 = vunpack.c.l.b16 %v555
        %v587 = vunpack.c.l.b16 %v556
        %v588 = vunpack.c.l.b16 %v557
        %v589 = vunpack.c.l.b16 %v558
        %v590 = vpack.c.b16 %v587, %v586
        %v591 = vpack.c.b16 %v589, %v588
        %v610 = vunpack.c.l.b16 %v559
        %v611 = vunpack.c.l.b16 %v560
        %v612 = vunpack.c.l.b16 %v561
        %v613 = vunpack.c.l.b16 %v562
        %v614 = vunpack.c.l.b16 %v563
        %v615 = vunpack.c.l.b16 %v564
        %v616 = vunpack.c.l.b16 %v565
        %v617 = vunpack.c.l.b16 %v566
        %v618 = vunpack.c.l.b16 %v567
        %v619 = vunpack.c.l.b16 %v568
        %v620 = vunpack.c.l.b16 %v569
        %v621 = vunpack.c.l.b16 %v570
        %v622 = vunpack.c.l.b16 %v571
        %v623 = vunpack.c.l.b16 %v572
        %v624 = vunpack.c.l.b16 %v573
        %v625 = vunpack.c.l.b16 %v574
        %v626 = vpack.c.b16 %v611, %v610
        %v627 = vpack.c.b16 %v613, %v612
        %v628 = vpack.c.b16 %v615, %v614
        %v629 = vpack.c.b16 %v617, %v616
        %v630 = vpack.c.b16 %v619, %v618
        %v631 = vpack.c.b16 %v621, %v620
        %v632 = vpack.c.b16 %v623, %v622
        %v633 = vpack.c.b16 %v625, %v624
        %642 = vmatprep.subr.bf16.mxu0 0
        %643 = vmatpush1.bf16.msra.mxu0 %v633
        %644 = vmatprep.subr.bf16.mxu0 0
        %645 = vmatpush1.bf16.msra.mxu0 %v632
        %646 = vmatprep.subr.bf16.mxu0 0
        %647 = vmatpush1.bf16.msra.mxu0 %v631
        %648 = vmatprep.subr.bf16.mxu0 0
        %649 = vmatpush1.bf16.msra.mxu0 %v630
        %650 = vmatprep.subr.bf16.mxu0 0
        %651 = vmatpush1.bf16.msra.mxu0 %v629
        %652 = vmatprep.subr.bf16.mxu0 0
        %653 = vmatpush1.bf16.msra.mxu0 %v628
        %654 = vmatprep.subr.bf16.mxu0 0
        %655 = vmatpush1.bf16.msra.mxu0 %v627
        %656 = vmatprep.subr.bf16.mxu0 0
        %657 = vmatpush1.bf16.msra.mxu0 %v626
        %658 = vmatprep.subr.bf16.mxu0 0
        %659 = vmatpush2.bf16.msra.mxu0 0
        %660 = vmatprep.subr.bf16.mxu0 0
        %661 = vmatpush2.bf16.msra.mxu0 0
        %662 = vmatprep.subr.bf16.mxu0 0
        %663 = vmatpush2.bf16.msra.mxu0 0
        %664 = vmatprep.subr.bf16.mxu0 0
        %665 = vmatpush2.bf16.msra.mxu0 0
        %666 = vmatprep.subr.bf16.mxu0 0
        %667 = vmatpush2.bf16.msra.mxu0 0
        %668 = vmatprep.subr.bf16.mxu0 0
        %669 = vmatpush2.bf16.msra.mxu0 0
        %670 = vmatprep.subr.bf16.mxu0 0
        %671 = vmatpush2.bf16.msra.mxu0 0
        %672 = vmatprep.subr.bf16.mxu0 0
        %673 = vmatpush2.bf16.msra.mxu0 0
        %674 = vmatprep.mubr.bf16.mxu0 0
        %675 = vmatmul.mubr.bf16.gmra.mxu0 %v590
        %v676 = vpop.f32.mrf.mxu0
        %v677 = vadd.f32 %v580, %v676
        %v678 = vpop.f32.mrf.mxu0
        %v679 = vpop.f32.mrf.mxu0
        %v680 = vadd.f32 %v580, %v679
        %v681 = vpop.f32.mrf.mxu0
        %682 = vmatprep.mubr.bf16.mxu0 0
        %683 = vmatmul.mubr.bf16.gmra.mxu0 %v591
        %v684 = vpop.f32.mrf.mxu0
        %v685 = vadd.f32 %v580, %v684
        %v686 = vpop.f32.mrf.mxu0
        %v687 = vpop.f32.mrf.mxu0
        %v688 = vadd.f32 %v580, %v687
        %v689 = vpop.f32.mrf.mxu0
        %690 = vdwg.mxu0
        %v691 = vmax.f32 %v677, 0.0
        %v692 = vmax.f32 %v680, 0.0
        %v693 = vmax.f32 %v685, 0.0
        %v694 = vmax.f32 %v688, 0.0
        %v695 = vpack.c.bf16 %v692, %v691
        %v696 = vpack.c.bf16 %v694, %v693
        %v697 = vld [vmem:[#allocation7] sm:$0xf]
        %v698 = vld [vmem:[#allocation7 + $0x4] sm:$0xf]
        %v699 = vld [vmem:[#allocation7 + $0x8] sm:$0xf]
        %v700 = vld [vmem:[#allocation7 + $0xc] sm:$0xf]
        %v701 = vld [vmem:[#allocation7 + $0x10] sm:$0xf]
        %v702 = vld [vmem:[#allocation7 + $0x14] sm:$0xf]
        %v703 = vld [vmem:[#allocation7 + $0x18] sm:$0xf]
        %v704 = vld [vmem:[#allocation7 + $0x1c] sm:$0xf]
        %v705 = vld [vmem:[#allocation7 + $0x20] sm:$0xf]
        %v706 = vld [vmem:[#allocation7 + $0x24] sm:$0xf]
        %v707 = vld [vmem:[#allocation7 + $0x28] sm:$0xf]
        %v708 = vld [vmem:[#allocation7 + $0x2c] sm:$0xf]
        %v709 = vld [vmem:[#allocation7 + $0x30] sm:$0xf]
        %v710 = vld [vmem:[#allocation7 + $0x34] sm:$0xf]
        %v711 = vld [vmem:[#allocation7 + $0x38] sm:$0xf]
        %v712 = vld [vmem:[#allocation7 + $0x3c] sm:$0xf]
        %v713 = vld [vmem:[%s4] sm:$0x1]
        %v715 = vlaneseq
        %v716 = vshrl.u32 %v715, 7
        %v717 = vsub.s32 0, %v716
        %v718 = vrot.slane %v713, %v717
        %v736 = vunpack.c.l.b16 %v697
        %v737 = vunpack.c.l.b16 %v698
        %v738 = vunpack.c.l.b16 %v699
        %v739 = vunpack.c.l.b16 %v700
        %v740 = vunpack.c.l.b16 %v701
        %v741 = vunpack.c.l.b16 %v702
        %v742 = vunpack.c.l.b16 %v703
        %v743 = vunpack.c.l.b16 %v704
        %v744 = vunpack.c.l.b16 %v705
        %v745 = vunpack.c.l.b16 %v706
        %v746 = vunpack.c.l.b16 %v707
        %v747 = vunpack.c.l.b16 %v708
        %v748 = vunpack.c.l.b16 %v709
        %v749 = vunpack.c.l.b16 %v710
        %v750 = vunpack.c.l.b16 %v711
        %v751 = vunpack.c.l.b16 %v712
        %v752 = vpack.c.b16 %v737, %v736
        %v753 = vpack.c.b16 %v739, %v738
        %v754 = vpack.c.b16 %v741, %v740
        %v755 = vpack.c.b16 %v743, %v742
        %v756 = vpack.c.b16 %v745, %v744
        %v757 = vpack.c.b16 %v747, %v746
        %v758 = vpack.c.b16 %v749, %v748
        %v759 = vpack.c.b16 %v751, %v750
        %768 = vmatprep.subr.bf16.mxu0 0
        %769 = vmatpush1.bf16.msra.mxu0 %v759
        %770 = vmatprep.subr.bf16.mxu0 0
        %771 = vmatpush1.bf16.msra.mxu0 %v758
        %772 = vmatprep.subr.bf16.mxu0 0
        %773 = vmatpush1.bf16.msra.mxu0 %v757
        %774 = vmatprep.subr.bf16.mxu0 0
        %775 = vmatpush1.bf16.msra.mxu0 %v756
        %776 = vmatprep.subr.bf16.mxu0 0
        %777 = vmatpush1.bf16.msra.mxu0 %v755
        %778 = vmatprep.subr.bf16.mxu0 0
        %779 = vmatpush1.bf16.msra.mxu0 %v754
        %780 = vmatprep.subr.bf16.mxu0 0
        %781 = vmatpush1.bf16.msra.mxu0 %v753
        %782 = vmatprep.subr.bf16.mxu0 0
        %783 = vmatpush1.bf16.msra.mxu0 %v752
        %784 = vmatprep.subr.bf16.mxu0 0
        %785 = vmatpush2.bf16.msra.mxu0 0
        %786 = vmatprep.subr.bf16.mxu0 0
        %787 = vmatpush2.bf16.msra.mxu0 0
        %788 = vmatprep.subr.bf16.mxu0 0
        %789 = vmatpush2.bf16.msra.mxu0 0
        %790 = vmatprep.subr.bf16.mxu0 0
        %791 = vmatpush2.bf16.msra.mxu0 0
        %792 = vmatprep.subr.bf16.mxu0 0
        %793 = vmatpush2.bf16.msra.mxu0 0
        %794 = vmatprep.subr.bf16.mxu0 0
        %795 = vmatpush2.bf16.msra.mxu0 0
        %796 = vmatprep.subr.bf16.mxu0 0
        %797 = vmatpush2.bf16.msra.mxu0 0
        %798 = vmatprep.subr.bf16.mxu0 0
        %799 = vmatpush2.bf16.msra.mxu0 0
        %800 = vmatprep.mubr.bf16.mxu0 0
        %801 = vmatmul.mubr.bf16.gmra.mxu0 %v695
        %v802 = vpop.f32.mrf.mxu0
        %v803 = vadd.f32 %v718, %v802
        %v804 = vpop.f32.mrf.mxu0
        %v805 = vpop.f32.mrf.mxu0
        %v806 = vadd.f32 %v718, %v805
        %v807 = vpop.f32.mrf.mxu0
        %808 = vmatprep.mubr.bf16.mxu0 0
        %809 = vmatmul.mubr.bf16.gmra.mxu0 %v696
        %v810 = vpop.f32.mrf.mxu0
        %v811 = vadd.f32 %v718, %v810
        %v812 = vpop.f32.mrf.mxu0
        %v813 = vpop.f32.mrf.mxu0
        %v814 = vadd.f32 %v718, %v813
        %v815 = vpop.f32.mrf.mxu0
        %816 = vdwg.mxu0
        %v817 = vmax.f32 %v803, 0.0
        %v818 = vmax.f32 %v806, 0.0
        %v819 = vmax.f32 %v811, 0.0
        %v820 = vmax.f32 %v814, 0.0
        %821 = vst [vmem:[%s535] sm:$0xff] %v817
        %822 = vst [vmem:[%s535 + $0x8] sm:$0xff] %v818
        %823 = vst [vmem:[%s535 + $0x10] sm:$0xff] %v819
        %824 = vst [vmem:[%s535 + $0x18] sm:$0xff] %v820
        %v825 = vpack.c.bf16 %v818, %v817
        %v826 = vpack.c.bf16 %v820, %v819
        %v827 = vld [vmem:[#allocation8] sm:$0xf]
        %v828 = vld [vmem:[#allocation8 + $0x4] sm:$0xf]
        %v829 = vld [vmem:[#allocation8 + $0x8] sm:$0xf]
        %v830 = vld [vmem:[#allocation8 + $0xc] sm:$0xf]
        %v831 = vld [vmem:[#allocation8 + $0x10] sm:$0xf]
        %v832 = vld [vmem:[#allocation8 + $0x14] sm:$0xf]
        %v833 = vld [vmem:[#allocation8 + $0x18] sm:$0xf]
        %v834 = vld [vmem:[#allocation8 + $0x1c] sm:$0xf]
        %v835 = vld [vmem:[#allocation8 + $0x20] sm:$0xf]
        %v836 = vld [vmem:[#allocation8 + $0x24] sm:$0xf]
        %v837 = vld [vmem:[#allocation8 + $0x28] sm:$0xf]
        %v838 = vld [vmem:[#allocation8 + $0x2c] sm:$0xf]
        %v839 = vld [vmem:[#allocation8 + $0x30] sm:$0xf]
        %v840 = vld [vmem:[#allocation8 + $0x34] sm:$0xf]
        %v841 = vld [vmem:[#allocation8 + $0x38] sm:$0xf]
        %v842 = vld [vmem:[#allocation8 + $0x3c] sm:$0xf]
        %v843 = vld [vmem:[%s6] sm:$0x1]
        %v845 = vlaneseq
        %v846 = vshrl.u32 %v845, 7
        %v847 = vsub.s32 0, %v846
        %v848 = vrot.slane %v843, %v847
        %v866 = vunpack.c.l.b16 %v827
        %v867 = vunpack.c.l.b16 %v828
        %v868 = vunpack.c.l.b16 %v829
        %v869 = vunpack.c.l.b16 %v830
        %v870 = vunpack.c.l.b16 %v831
        %v871 = vunpack.c.l.b16 %v832
        %v872 = vunpack.c.l.b16 %v833
        %v873 = vunpack.c.l.b16 %v834
        %v874 = vunpack.c.l.b16 %v835
        %v875 = vunpack.c.l.b16 %v836
        %v876 = vunpack.c.l.b16 %v837
        %v877 = vunpack.c.l.b16 %v838
        %v878 = vunpack.c.l.b16 %v839
        %v879 = vunpack.c.l.b16 %v840
        %v880 = vunpack.c.l.b16 %v841
        %v881 = vunpack.c.l.b16 %v842
        %v882 = vpack.c.b16 %v867, %v866
        %v883 = vpack.c.b16 %v869, %v868
        %v884 = vpack.c.b16 %v871, %v870
        %v885 = vpack.c.b16 %v873, %v872
        %v886 = vpack.c.b16 %v875, %v874
        %v887 = vpack.c.b16 %v877, %v876
        %v888 = vpack.c.b16 %v879, %v878
        %v889 = vpack.c.b16 %v881, %v880
        %898 = vmatprep.subr.bf16.mxu0 0
        %899 = vmatpush1.bf16.msra.mxu0 %v889
        %900 = vmatprep.subr.bf16.mxu0 0
        %901 = vmatpush1.bf16.msra.mxu0 %v888
        %902 = vmatprep.subr.bf16.mxu0 0
        %903 = vmatpush1.bf16.msra.mxu0 %v887
        %904 = vmatprep.subr.bf16.mxu0 0
        %905 = vmatpush1.bf16.msra.mxu0 %v886
        %906 = vmatprep.subr.bf16.mxu0 0
        %907 = vmatpush1.bf16.msra.mxu0 %v885
        %908 = vmatprep.subr.bf16.mxu0 0
        %909 = vmatpush1.bf16.msra.mxu0 %v884
        %910 = vmatprep.subr.bf16.mxu0 0
        %911 = vmatpush1.bf16.msra.mxu0 %v883
        %912 = vmatprep.subr.bf16.mxu0 0
        %913 = vmatpush1.bf16.msra.mxu0 %v882
        %914 = vmatprep.subr.bf16.mxu0 0
        %915 = vmatpush2.bf16.msra.mxu0 0
        %916 = vmatprep.subr.bf16.mxu0 0
        %917 = vmatpush2.bf16.msra.mxu0 0
        %918 = vmatprep.subr.bf16.mxu0 0
        %919 = vmatpush2.bf16.msra.mxu0 0
        %920 = vmatprep.subr.bf16.mxu0 0
        %921 = vmatpush2.bf16.msra.mxu0 0
        %922 = vmatprep.subr.bf16.mxu0 0
        %923 = vmatpush2.bf16.msra.mxu0 0
        %924 = vmatprep.subr.bf16.mxu0 0
        %925 = vmatpush2.bf16.msra.mxu0 0
        %926 = vmatprep.subr.bf16.mxu0 0
        %927 = vmatpush2.bf16.msra.mxu0 0
        %928 = vmatprep.subr.bf16.mxu0 0
        %929 = vmatpush2.bf16.msra.mxu0 0
        %930 = vmatprep.mubr.bf16.mxu0 0
        %931 = vmatmul.mubr.bf16.gmra.mxu0 %v825
        %v932 = vpop.f32.mrf.mxu0
        %v933 = vadd.f32 %v848, %v932
        %v934 = vpop.f32.mrf.mxu0
        %v935 = vpop.f32.mrf.mxu0
        %v936 = vadd.f32 %v848, %v935
        %v937 = vpop.f32.mrf.mxu0
        %938 = vmatprep.mubr.bf16.mxu0 0
        %939 = vmatmul.mubr.bf16.gmra.mxu0 %v826
        %v940 = vpop.f32.mrf.mxu0
        %v941 = vadd.f32 %v848, %v940
        %v942 = vpop.f32.mrf.mxu0
        %v943 = vpop.f32.mrf.mxu0
        %v944 = vadd.f32 %v848, %v943
        %v945 = vpop.f32.mrf.mxu0
        %946 = vdwg.mxu0
        %v947 = vmax.f32 %v933, 0.0
        %v948 = vmax.f32 %v936, 0.0
        %v949 = vmax.f32 %v941, 0.0
        %v950 = vmax.f32 %v944, 0.0
        %v951 = vpack.c.bf16 %v948, %v947
        %v952 = vpack.c.bf16 %v950, %v949
        %v953 = vld [vmem:[#allocation10] sm:$0xf]
        %v954 = vld [vmem:[#allocation10 + $0x4] sm:$0xf]
        %v955 = vld [vmem:[#allocation10 + $0x8] sm:$0xf]
        %v956 = vld [vmem:[#allocation10 + $0xc] sm:$0xf]
        %v957 = vld [vmem:[#allocation10 + $0x10] sm:$0xf]
        %v958 = vld [vmem:[#allocation10 + $0x14] sm:$0xf]
        %v959 = vld [vmem:[#allocation10 + $0x18] sm:$0xf]
        %v960 = vld [vmem:[#allocation10 + $0x1c] sm:$0xf]
        %v961 = vld [vmem:[#allocation10 + $0x20] sm:$0xf]
        %v962 = vld [vmem:[#allocation10 + $0x24] sm:$0xf]
        %v963 = vld [vmem:[#allocation10 + $0x28] sm:$0xf]
        %v964 = vld [vmem:[#allocation10 + $0x2c] sm:$0xf]
        %v965 = vld [vmem:[#allocation10 + $0x30] sm:$0xf]
        %v966 = vld [vmem:[#allocation10 + $0x34] sm:$0xf]
        %v967 = vld [vmem:[#allocation10 + $0x38] sm:$0xf]
        %v968 = vld [vmem:[#allocation10 + $0x3c] sm:$0xf]
        %v969 = vld [vmem:[%s8] sm:$0x1]
        %v971 = vlaneseq
        %v972 = vshrl.u32 %v971, 7
        %v973 = vsub.s32 0, %v972
        %v974 = vrot.slane %v969, %v973
        %v992 = vunpack.c.l.b16 %v953
        %v993 = vunpack.c.l.b16 %v954
        %v994 = vunpack.c.l.b16 %v955
        %v995 = vunpack.c.l.b16 %v956
        %v996 = vunpack.c.l.b16 %v957
        %v997 = vunpack.c.l.b16 %v958
        %v998 = vunpack.c.l.b16 %v959
        %v999 = vunpack.c.l.b16 %v960
        %v1000 = vunpack.c.l.b16 %v961
        %v1001 = vunpack.c.l.b16 %v962
        %v1002 = vunpack.c.l.b16 %v963
        %v1003 = vunpack.c.l.b16 %v964
        %v1004 = vunpack.c.l.b16 %v965
        %v1005 = vunpack.c.l.b16 %v966
        %v1006 = vunpack.c.l.b16 %v967
        %v1007 = vunpack.c.l.b16 %v968
        %v1008 = vpack.c.b16 %v993, %v992
        %v1009 = vpack.c.b16 %v995, %v994
        %v1010 = vpack.c.b16 %v997, %v996
        %v1011 = vpack.c.b16 %v999, %v998
        %v1012 = vpack.c.b16 %v1001, %v1000
        %v1013 = vpack.c.b16 %v1003, %v1002
        %v1014 = vpack.c.b16 %v1005, %v1004
        %v1015 = vpack.c.b16 %v1007, %v1006
        %1024 = vmatprep.subr.bf16.mxu0 0
        %1025 = vmatpush1.bf16.msra.mxu0 %v1015
        %1026 = vmatprep.subr.bf16.mxu0 0
        %1027 = vmatpush1.bf16.msra.mxu0 %v1014
        %1028 = vmatprep.subr.bf16.mxu0 0
        %1029 = vmatpush1.bf16.msra.mxu0 %v1013
        %1030 = vmatprep.subr.bf16.mxu0 0
        %1031 = vmatpush1.bf16.msra.mxu0 %v1012
        %1032 = vmatprep.subr.bf16.mxu0 0
        %1033 = vmatpush1.bf16.msra.mxu0 %v1011
        %1034 = vmatprep.subr.bf16.mxu0 0
        %1035 = vmatpush1.bf16.msra.mxu0 %v1010
        %1036 = vmatprep.subr.bf16.mxu0 0
        %1037 = vmatpush1.bf16.msra.mxu0 %v1009
        %1038 = vmatprep.subr.bf16.mxu0 0
        %1039 = vmatpush1.bf16.msra.mxu0 %v1008
        %1040 = vmatprep.subr.bf16.mxu0 0
        %1041 = vmatpush2.bf16.msra.mxu0 0
        %1042 = vmatprep.subr.bf16.mxu0 0
        %1043 = vmatpush2.bf16.msra.mxu0 0
        %1044 = vmatprep.subr.bf16.mxu0 0
        %1045 = vmatpush2.bf16.msra.mxu0 0
        %1046 = vmatprep.subr.bf16.mxu0 0
        %1047 = vmatpush2.bf16.msra.mxu0 0
        %1048 = vmatprep.subr.bf16.mxu0 0
        %1049 = vmatpush2.bf16.msra.mxu0 0
        %1050 = vmatprep.subr.bf16.mxu0 0
        %1051 = vmatpush2.bf16.msra.mxu0 0
        %1052 = vmatprep.subr.bf16.mxu0 0
        %1053 = vmatpush2.bf16.msra.mxu0 0
        %1054 = vmatprep.subr.bf16.mxu0 0
        %1055 = vmatpush2.bf16.msra.mxu0 0
        %1056 = vmatprep.mubr.bf16.mxu0 0
        %1057 = vmatmul.mubr.bf16.gmra.mxu0 %v951
        %v1058 = vpop.f32.mrf.mxu0
        %v1059 = vadd.f32 %v974, %v1058
        %v1060 = vpop.f32.mrf.mxu0
        %v1061 = vpop.f32.mrf.mxu0
        %v1062 = vadd.f32 %v974, %v1061
        %v1063 = vpop.f32.mrf.mxu0
        %1064 = vmatprep.mubr.bf16.mxu0 0
        %1065 = vmatmul.mubr.bf16.gmra.mxu0 %v952
        %v1066 = vpop.f32.mrf.mxu0
        %v1067 = vadd.f32 %v974, %v1066
        %v1068 = vpop.f32.mrf.mxu0
        %v1069 = vpop.f32.mrf.mxu0
        %v1070 = vadd.f32 %v974, %v1069
        %v1071 = vpop.f32.mrf.mxu0
        %1072 = vdwg.mxu0
        %v1073 = vmax.f32 %v1059, 0.0
        %v1074 = vmax.f32 %v1062, 0.0
        %v1075 = vmax.f32 %v1067, 0.0
        %v1076 = vmax.f32 %v1070, 0.0
        %1077 = vst [vmem:[%s542] sm:$0xff] %v1073
        %1078 = vst [vmem:[%s542 + $0x8] sm:$0xff] %v1074
        %1079 = vst [vmem:[%s542 + $0x10] sm:$0xff] %v1075
        %1080 = vst [vmem:[%s542 + $0x18] sm:$0xff] %v1076
        %v1081 = vld [vmem:[#allocation11] sm:$0xf]
        %v1082 = vld [vmem:[#allocation11 + $0x4] sm:$0xf]
        %v1083 = vld [vmem:[#allocation11 + $0x8] sm:$0xf]
        %v1084 = vld [vmem:[#allocation11 + $0xc] sm:$0xf]
        %v1085 = vld [vmem:[#allocation11 + $0x10] sm:$0xf]
        %v1086 = vld [vmem:[#allocation11 + $0x14] sm:$0xf]
        %v1087 = vld [vmem:[#allocation11 + $0x18] sm:$0xf]
        %v1088 = vld [vmem:[#allocation11 + $0x1c] sm:$0xf]
        %v1089 = vld [vmem:[#allocation11 + $0x20] sm:$0xf]
        %v1090 = vld [vmem:[#allocation11 + $0x24] sm:$0xf]
        %v1091 = vld [vmem:[#allocation11 + $0x28] sm:$0xf]
        %v1092 = vld [vmem:[#allocation11 + $0x2c] sm:$0xf]
        %v1093 = vld [vmem:[#allocation11 + $0x30] sm:$0xf]
        %v1094 = vld [vmem:[#allocation11 + $0x34] sm:$0xf]
        %v1095 = vld [vmem:[#allocation11 + $0x38] sm:$0xf]
        %v1096 = vld [vmem:[#allocation11 + $0x3c] sm:$0xf]
        %v1097 = vld [vmem:[%s10] sm:$0x1]
        %v1099 = vlaneseq
        %v1100 = vshrl.u32 %v1099, 7
        %v1101 = vsub.s32 0, %v1100
        %v1102 = vrot.slane %v1097, %v1101
        %v1120 = vunpack.c.l.b16 %v1081
        %v1121 = vunpack.c.l.b16 %v1082
        %v1122 = vunpack.c.l.b16 %v1083
        %v1123 = vunpack.c.l.b16 %v1084
        %v1124 = vunpack.c.l.b16 %v1085
        %v1125 = vunpack.c.l.b16 %v1086
        %v1126 = vunpack.c.l.b16 %v1087
        %v1127 = vunpack.c.l.b16 %v1088
        %v1128 = vunpack.c.l.b16 %v1089
        %v1129 = vunpack.c.l.b16 %v1090
        %v1130 = vunpack.c.l.b16 %v1091
        %v1131 = vunpack.c.l.b16 %v1092
        %v1132 = vunpack.c.l.b16 %v1093
        %v1133 = vunpack.c.l.b16 %v1094
        %v1134 = vunpack.c.l.b16 %v1095
        %v1135 = vunpack.c.l.b16 %v1096
        %v1136 = vpack.c.b16 %v1121, %v1120
        %v1137 = vpack.c.b16 %v1123, %v1122
        %v1138 = vpack.c.b16 %v1125, %v1124
        %v1139 = vpack.c.b16 %v1127, %v1126
        %v1140 = vpack.c.b16 %v1129, %v1128
        %v1141 = vpack.c.b16 %v1131, %v1130
        %v1142 = vpack.c.b16 %v1133, %v1132
        %v1143 = vpack.c.b16 %v1135, %v1134
        %1152 = vmatprep.subr.bf16.mxu0 0
        %1153 = vmatpush1.bf16.msra.mxu0 %v1143
        %1154 = vmatprep.subr.bf16.mxu0 0
        %1155 = vmatpush1.bf16.msra.mxu0 %v1142
        %1156 = vmatprep.subr.bf16.mxu0 0
        %1157 = vmatpush1.bf16.msra.mxu0 %v1141
        %1158 = vmatprep.subr.bf16.mxu0 0
        %1159 = vmatpush1.bf16.msra.mxu0 %v1140
        %1160 = vmatprep.subr.bf16.mxu0 0
        %1161 = vmatpush1.bf16.msra.mxu0 %v1139
        %1162 = vmatprep.subr.bf16.mxu0 0
        %1163 = vmatpush1.bf16.msra.mxu0 %v1138
        %1164 = vmatprep.subr.bf16.mxu0 0
        %1165 = vmatpush1.bf16.msra.mxu0 %v1137
        %1166 = vmatprep.subr.bf16.mxu0 0
        %1167 = vmatpush1.bf16.msra.mxu0 %v1136
        %1168 = vmatprep.subr.bf16.mxu0 0
        %1169 = vmatpush2.bf16.msra.mxu0 0
        %1170 = vmatprep.subr.bf16.mxu0 0
        %1171 = vmatpush2.bf16.msra.mxu0 0
        %1172 = vmatprep.subr.bf16.mxu0 0
        %1173 = vmatpush2.bf16.msra.mxu0 0
        %1174 = vmatprep.subr.bf16.mxu0 0
        %1175 = vmatpush2.bf16.msra.mxu0 0
        %1176 = vmatprep.subr.bf16.mxu0 0
        %1177 = vmatpush2.bf16.msra.mxu0 0
        %1178 = vmatprep.subr.bf16.mxu0 0
        %1179 = vmatpush2.bf16.msra.mxu0 0
        %1180 = vmatprep.subr.bf16.mxu0 0
        %1181 = vmatpush2.bf16.msra.mxu0 0
        %1182 = vmatprep.subr.bf16.mxu0 0
        %1183 = vmatpush2.bf16.msra.mxu0 0
        %1184 = vmatprep.mubr.bf16.mxu0 0
        %1185 = vmatmul.mubr.bf16.gmra.mxu0 %v825
        %v1186 = vpop.f32.mrf.mxu0
        %v1187 = vadd.f32 %v1102, %v1186
        %v1188 = vpop.f32.mrf.mxu0
        %v1189 = vpop.f32.mrf.mxu0
        %v1190 = vadd.f32 %v1102, %v1189
        %v1191 = vpop.f32.mrf.mxu0
        %1192 = vmatprep.mubr.bf16.mxu0 0
        %1193 = vmatmul.mubr.bf16.gmra.mxu0 %v826
        %v1194 = vpop.f32.mrf.mxu0
        %v1195 = vadd.f32 %v1102, %v1194
        %v1196 = vpop.f32.mrf.mxu0
        %v1197 = vpop.f32.mrf.mxu0
        %v1198 = vadd.f32 %v1102, %v1197
        %v1199 = vpop.f32.mrf.mxu0
        %1200 = vdwg.mxu0
        %v1201 = vxor.u32 %v1187, 2147483648
        %v1202 = vxor.u32 %v1190, 2147483648
        %v1203 = vxor.u32 %v1195, 2147483648
        %v1204 = vxor.u32 %v1198, 2147483648
        %v1205 = vmul.f32 %v1201, 1.442695
        %v1206 = vpow.pop %v1205
        %v1207 = vmul.f32 %v1202, 1.442695
        %v1208 = vpow.pop %v1207
        %v1209 = vmul.f32 %v1203, 1.442695
        %v1210 = vpow.pop %v1209
        %v1211 = vmul.f32 %v1204, 1.442695
        %v1212 = vpow.pop %v1211
        %v1213 = vadd.f32 %v1206, 1.0
        %v1214 = vadd.f32 %v1208, 1.0
        %v1215 = vadd.f32 %v1210, 1.0
        %v1216 = vadd.f32 %v1212, 1.0
        %v1217 = vrcp.pop %v1213
        %v1218 = vmul.f32 1.0, %v1217
        %v1219 = vrcp.pop %v1214
        %v1220 = vmul.f32 1.0, %v1219
        %v1221 = vrcp.pop %v1215
        %v1222 = vmul.f32 1.0, %v1221
        %v1223 = vrcp.pop %v1216
        %v1224 = vmul.f32 1.0, %v1223
        %1225 = vst [vmem:[%s549] sm:$0xff] %v1218
        %1226 = vst [vmem:[%s549 + $0x8] sm:$0xff] %v1220
        %1227 = vst [vmem:[%s549 + $0x10] sm:$0xff] %v1222
        %1228 = vst [vmem:[%s549 + $0x18] sm:$0xff] %v1224
        %s1229 = sand.u32 %s281, 1
        %s1230 = scalar_lea.sflag [#allocation4], %s1229
        %s1231 = sand.u32 %s281, 1
        %s1232 = smul.addr %s1231, 32
        %s1233 = scalar_lea.vmem [#allocation13], %s1232
        %s1234 = sand.u32 %s37, 1
        %s1235 = scalar_lea.sflag [#allocation15], %s1234
        %s1236 = sand.u32 %s307, 1
        %s1237 = smul.addr %s1236, 32
        %s1238 = scalar_lea.vmem [#allocation14], %s1237
        %s1239 = sand.u32 %s37, 1
        %s1240 = scalar_lea.sflag [#allocation15], %s1239
        %s1241 = sand.u32 %s333, 1
        %s1242 = smul.addr %s1241, 32
        %s1243 = scalar_lea.vmem [#allocation16], %s1242
        // Predicated region
        $region89: #{tpu_custom_call.1} parent=63 // pred_check
          %p1244 = pneg %p291
        $region90: #{tpu_custom_call.1} parent=63 // pred_check_branch
          %1246 = sbr.rel (%p1244) target = $region92
        $region91: #{tpu_custom_call.1} parent=63 // pred_region
          %s1247 = smul.u32 4, %s37
          %s1249 = ssub.s32 512, 512
          %1250 = vsyncadd %s1230, %s1249
          %s1251 = smul.addr %s1247, 128
          %s1252 = scalar_lea.hbm %s11, %s1251
          %s1253 = sshll.u32 %s1233, 4
          %s1254 = int_to_ptr.vmem [resolvable:$true] %s1253
          %1259 = dma.vmem_to_hbm [thread:$0]  %s1254, 512, %s1252, %s1230, 128, 128, 8
        $region92: #{tpu_custom_call.1} parent=63 // pred_fallthru
          _
        // Predicated region
        $region93: #{tpu_custom_call.1} parent=63 // pred_check
          %p1260 = pneg %p317
        $region94: #{tpu_custom_call.1} parent=63 // pred_check_branch
          %1262 = sbr.rel (%p1260) target = $region96
        $region95: #{tpu_custom_call.1} parent=63 // pred_region
          %s1263 = smul.u32 4, %s37
          %s1265 = ssub.s32 512, 512
          %1266 = vsyncadd %s1235, %s1265
          %s1267 = smul.addr %s1263, 128
          %s1268 = scalar_lea.hbm %s12, %s1267
          %s1269 = sshll.u32 %s1238, 4
          %s1270 = int_to_ptr.vmem [resolvable:$true] %s1269
          %1275 = dma.vmem_to_hbm [thread:$0]  %s1270, 512, %s1268, %s1235, 128, 128, 8
        $region96: #{tpu_custom_call.1} parent=63 // pred_fallthru
          _
        // Predicated region
        $region97: #{tpu_custom_call.1} parent=63 // pred_check
          %p1276 = pneg %p343
        $region98: #{tpu_custom_call.1} parent=63 // pred_check_branch
          %1278 = sbr.rel (%p1276) target = $region100
        $region99: #{tpu_custom_call.1} parent=63 // pred_region
          %s1279 = smul.u32 4, %s37
          %s1281 = ssub.s32 512, 512
          %1282 = vsyncadd %s1240, %s1281
          %s1283 = smul.addr %s1279, 128
          %s1284 = scalar_lea.hbm %s13, %s1283
          %s1285 = sshll.u32 %s1243, 4
          %s1286 = int_to_ptr.vmem [resolvable:$true] %s1285
          %1291 = dma.vmem_to_hbm [thread:$0]  %s1286, 512, %s1284, %s1240, 128, 128, 8
        $region100: #{tpu_custom_call.1} parent=63 // pred_fallthru
          _
      $region64: #{tpu_custom_call.1} parent=5 // pred_fallthru
        _
      %p1292 = scmp.le.s32.totalorder 2, %s32
      // Predicated region
      $region101: #{tpu_custom_call.1} parent=5 // pred_check
        %p1293 = pneg %p1292
      $region102: #{tpu_custom_call.1} parent=5 // pred_check_branch
        %1295 = sbr.rel (%p1293) target = $region104
      $region103: #{tpu_custom_call.1} parent=5 // pred_region
        %s1296 = ssub.s32 %s32, 2
        // Predicated region
        $region105: #{tpu_custom_call.1} parent=103 // pred_check
          %p1297 = pneg %p297
        $region106: #{tpu_custom_call.1} parent=103 // pred_check_branch
          %1299 = sbr.rel (%p1297) target = $region108
        $region107: #{tpu_custom_call.1} parent=103 // pred_region
          %s1300 = sand.u32 %s282, 1
          %s1301 = scalar_lea.sflag [#allocation4], %s1300
          %s1302 = sand.u32 %s282, 1
          %s1303 = smul.addr %s1302, 32
          %s1304 = scalar_lea.vmem [#allocation13], %s1303
          %1305 = dma.done %s1301, 512
        $region108: #{tpu_custom_call.1} parent=103 // pred_fallthru
          _
        // Predicated region
        $region109: #{tpu_custom_call.1} parent=103 // pred_check
          %p1306 = pneg %p323
        $region110: #{tpu_custom_call.1} parent=103 // pred_check_branch
          %1308 = sbr.rel (%p1306) target = $region112
        $region111: #{tpu_custom_call.1} parent=103 // pred_region
          %s1309 = sand.u32 %s38, 1
          %s1310 = scalar_lea.sflag [#allocation15], %s1309
          %s1311 = sand.u32 %s308, 1
          %s1312 = smul.addr %s1311, 32
          %s1313 = scalar_lea.vmem [#allocation14], %s1312
          %1314 = dma.done %s1310, 512
        $region112: #{tpu_custom_call.1} parent=103 // pred_fallthru
          _
        // Predicated region
        $region113: #{tpu_custom_call.1} parent=103 // pred_check
          %p1315 = pneg %p349
        $region114: #{tpu_custom_call.1} parent=103 // pred_check_branch
          %1317 = sbr.rel (%p1315) target = $region116
        $region115: #{tpu_custom_call.1} parent=103 // pred_region
          %s1318 = sand.u32 %s38, 1
          %s1319 = scalar_lea.sflag [#allocation15], %s1318
          %s1320 = sand.u32 %s334, 1
          %s1321 = smul.addr %s1320, 32
          %s1322 = scalar_lea.vmem [#allocation16], %s1321
          %1323 = dma.done %s1319, 512
        $region116: #{tpu_custom_call.1} parent=103 // pred_fallthru
          _
      $region104: #{tpu_custom_call.1} parent=5 // pred_fallthru
        _
    $region6: #{tpu_custom_call.1} parent=1 // loop_footer
      %s36 = sadd.s32 1, %s32
    $region7: #{tpu_custom_call.1} parent=1 // loop_footer_branch
      %31 = sbr.rel target = $region3
    $region8: #{tpu_custom_call.1} parent=1 // loop_exit
      _
    %1324 = vsyncpa [#allocation3], 1
    %s1325 = scalar_lea.sflag [#allocation3], 1
    %1326 = vsyncpa %s1325, 1
    %1327 = vsyncpa [#allocation6], 1
    %1328 = vsyncpa [#allocation9], 1
    %1329 = vsyncpa [#allocation12], 1
    %1330 = vsyncpa [#allocation4], 1
    %s1331 = scalar_lea.sflag [#allocation4], 1
    %1332 = vsyncpa %s1331, 1
    %1333 = vsyncpa [#allocation15], 1
    %s1334 = scalar_lea.sflag [#allocation15], 1
    %1335 = vsyncpa %s1334, 1

// kernel: tpu_custom_call.1
$region0: #{tpu_custom_call.1}
  #allocation0 [shape = 'u32[]', space=smem, size = 0x4, offset = 0x4, fixed_abs, tag = 'smem constant byte address 0x4 - core index']
  #allocation1 [shape = 'u32[144,128]{1,0:T(1,128)}', space=vmem, size = 0x12000, scoped, tag = 'internal scratch']
  %s0 = inlined_call_operand.hbm [shape: bf16[64,128], index: 0, kind: input, shape index: {}]
  %s1 = inlined_call_operand.hbm [shape: bf16[128,128], index: 1, kind: input, shape index: {}]
  %s2 = inlined_call_operand.vmem [shape: f32[1,128], index: 2, kind: input, shape index: {}]
  %s3 = inlined_call_operand.hbm [shape: bf16[128,128], index: 3, kind: input, shape index: {}]
  %s4 = inlined_call_operand.vmem [shape: f32[1,128], index: 4, kind: input, shape index: {}]
  %s5 = inlined_call_operand.hbm [shape: bf16[128,128], index: 5, kind: input, shape index: {}]
  %s6 = inlined_call_operand.vmem [shape: f32[1,128], index: 6, kind: input, shape index: {}]
  %s7 = inlined_call_operand.hbm [shape: bf16[128,128], index: 7, kind: input, shape index: {}]
  %s8 = inlined_call_operand.vmem [shape: f32[1,128], index: 8, kind: input, shape index: {}]
  %s9 = inlined_call_operand.hbm [shape: bf16[128,128], index: 9, kind: input, shape index: {}]
  %s10 = inlined_call_operand.vmem [shape: f32[1,128], index: 10, kind: input, shape index: {}]
  %s11 = inlined_call_operand.hbm [shape: f32[64,128], index: 11, kind: output, shape index: {0}]
  %s12 = inlined_call_operand.hbm [shape: f32[64,128], index: 12, kind: output, shape index: {1}]
  %s13 = inlined_call_operand.hbm [shape: f32[64,128], index: 13, kind: output, shape index: {2}]
  %14 = xla_tuple %s11, %s12, %s13
  %s15 = sld [smem:[#allocation0]]
  $region117: #{tpu_custom_call.1} parent=0
    _
  %s17 = ssub.s32 1, %s15
  %s18 = scalar_select 0, %s17, %s15
  $region1: #{tpu_custom_call.1} parent=0
    #allocation2 [shape = 'u8[16384]{0}', space=vmem, size = 0x4000, scoped, tag = 'input window, operand 0']
    #allocation3 [shape = 's32[2]{0}', space=sflag, size = 0x8, scoped, tag = 'scoped memory for tpu_custom_call.1']
    #allocation4 [shape = 's32[2]{0}', space=sflag, size = 0x8, scoped, tag = 'scoped memory for tpu_custom_call.1']
    #allocation5 [shape = 'u8[32768]{0}', space=vmem, size = 0x8000, scoped, tag = 'input window, operand 1, single buffered']
    #allocation6 [shape = 's32[1]{0}', space=sflag, size = 0x4, scoped, tag = 'scoped memory for tpu_custom_call.1']
    #allocation7 [shape = 'u8[32768]{0}', space=vmem, size = 0x8000, scoped, tag = 'input window, operand 3, single buffered']
    #allocation8 [shape = 'u8[32768]{0}', space=vmem, size = 0x8000, scoped, tag = 'input window, operand 5, single buffered']
    #allocation9 [shape = 's32[1]{0}', space=sflag, size = 0x4, scoped, tag = 'scoped memory for tpu_custom_call.1']
    #allocation10 [shape = 'u8[32768]{0}', space=vmem, size = 0x8000, scoped, tag = 'input window, operand 7, single buffered']
    #allocation11 [shape = 'u8[32768]{0}', space=vmem, size = 0x8000, scoped, tag = 'input window, operand 9, single buffered']
    #allocation12 [shape = 's32[1]{0}', space=sflag, size = 0x4, scoped, tag = 'scoped memory for tpu_custom_call.1']
    #allocation13 [shape = 'u8[32768]{0}', space=vmem, size = 0x8000, scoped, tag = 'output window, operand 0']
    #allocation14 [shape = 'u8[32768]{0}', space=vmem, size = 0x8000, scoped, tag = 'output window, operand 1']
    #allocation15 [shape = 's32[2]{0}', space=sflag, size = 0x8, scoped, tag = 'scoped memory for tpu_custom_call.1']
    #allocation16 [shape = 'u8[32768]{0}', space=vmem, size = 0x8000, scoped, tag = 'output window, operand 2']
    %19 = vsyncpa [#allocation3], 0
    %s20 = scalar_lea.sflag [#allocation3], 1
    %21 = vsyncpa %s20, 0
    %22 = vsyncpa [#allocation6], 0
    %23 = vsyncpa [#allocation9], 0
    %24 = vsyncpa [#allocation12], 0
    %25 = vsyncpa [#allocation4], 0
    %s26 = scalar_lea.sflag [#allocation4], 1
    %27 = vsyncpa %s26, 0
    %28 = vsyncpa [#allocation15], 0
    %s29 = scalar_lea.sflag [#allocation15], 1
    %30 = vsyncpa %s29, 0
    loop: start=0, step=1, limit=4
    $region2: #{tpu_custom_call.1} parent=1 // loop_pre_header
      _
    $region3: #{tpu_custom_call.1} parent=1 // loop_header
      %s32 = sphi 0, %s36
      %p33 = scmp.ge.s32.totalorder %s32, 4
      %s42 = sphi 0, %s44
      %s45 = sphi 0, %s42
      %s46 = sphi 0, %s45
      %s62 = sphi 0, %s46
      %s66 = sphi 0, %s66
      %s68 = sphi 0, %s66
      %s69 = sphi 0, %s68
      %s83 = sphi 0, %s69
      %s87 = sphi 0, %s87
      %s89 = sphi 0, %s87
      %s90 = sphi 0, %s89
      %s104 = sphi 0, %s90
      %s108 = sphi 0, %s108
      %s110 = sphi 0, %s108
      %s111 = sphi 0, %s110
      %s125 = sphi 0, %s111
      %s129 = sphi 0, %s129
      %s131 = sphi 0, %s129
      %s132 = sphi 0, %s131
      %s146 = sphi 0, %s132
      %s150 = sphi 0, %s150
      %s152 = sphi 0, %s150
      %s153 = sphi 0, %s152
      %s167 = sphi 0, %s153
      %s171 = sphi 0, %s171
      %s173 = sphi 0, %s171
      %s174 = sphi 0, %s173
      %s188 = sphi 0, %s174
      %s192 = sphi 0, %s192
      %s194 = sphi 0, %s192
      %s195 = sphi 0, %s194
      %s209 = sphi 0, %s195
      %s213 = sphi 0, %s213
      %s215 = sphi 0, %s213
      %s216 = sphi 0, %s215
      %s230 = sphi 0, %s216
      %s234 = sphi 0, %s234
      %s236 = sphi 0, %s234
      %s237 = sphi 0, %s236
      %s251 = sphi 0, %s237
      %s255 = sphi 0, %s255
      %s257 = sphi 0, %s255
      %s258 = sphi 0, %s257
      %s272 = sphi 0, %s258
      %s278 = sphi 0, %s280
      %s281 = sphi 0, %s278
      %s282 = sphi 0, %s281
      %s298 = sphi 0, %s282
      %s304 = sphi 0, %s306
      %s307 = sphi 0, %s304
      %s308 = sphi 0, %s307
      %s324 = sphi 0, %s308
      %s330 = sphi 0, %s332
      %s333 = sphi 0, %s330
      %s334 = sphi 0, %s333
      %s350 = sphi 0, %s334
    $region4: #{tpu_custom_call.1} parent=1 // loop_header_branch
      %35 = sbr.rel (%p33) target = $region8
    $region5: #{tpu_custom_call.1} parent=1 // loop_body
      %s37 = ssub.s32 %s32, 1
      %s38 = ssub.s32 %s32, 2
      %s39 = sadd.s32 %s32, 1
      %s40 = ssub.s32 %s32, %s39
      %p41 = scmp.eq.s32.totalorder %s40, 0
      %s43 = sadd.s32 %s42, 1
      %s44 = scalar_select %p41, %s42, %s43
      %p47 = pneg %p41
      %p48 = scmp.eq.s32.totalorder %s32, 1
      %p49 = por %p47, %p48
      %p50 = scmp.ne.s32.totalorder %s42, %s45
      %p51 = scmp.eq.s32.totalorder %s32, 0
      %p52 = por %p50, %p51
      %p53 = scmp.ne.s32.totalorder %s42, %s45
      %p54 = scmp.eq.s32.totalorder %s37, 1
      %p55 = por %p53, %p54
      %p56 = scmp.ne.s32.totalorder %s45, %s46
      %p57 = scmp.eq.s32.totalorder %s37, 0
      %p58 = por %p56, %p57
      %p59 = scmp.ne.s32.totalorder %s45, %s46
      %p60 = scmp.eq.s32.totalorder %s38, 1
      %p61 = por %p59, %p60
      %p63 = scmp.ne.s32.totalorder %s46, %s62
      %p64 = scmp.eq.s32.totalorder %s38, 0
      %p65 = por %p63, %p64
      %s67 = sadd.s32 %s66, 1
      %p70 = scmp.eq.s32.totalorder %s32, 1
      %p71 = scmp.ne.s32.totalorder %s66, %s68
      %p72 = scmp.eq.s32.totalorder %s32, 0
      %p73 = por %p71, %p72
      %p74 = scmp.ne.s32.totalorder %s66, %s68
      %p75 = scmp.eq.s32.totalorder %s37, 1
      %p76 = por %p74, %p75
      %p77 = scmp.ne.s32.totalorder %s68, %s69
      %p78 = scmp.eq.s32.totalorder %s37, 0
      %p79 = por %p77, %p78
      %p80 = scmp.ne.s32.totalorder %s68, %s69
      %p81 = scmp.eq.s32.totalorder %s38, 1
      %p82 = por %p80, %p81
      %p84 = scmp.ne.s32.totalorder %s69, %s83
      %p85 = scmp.eq.s32.totalorder %s38, 0
      %p86 = por %p84, %p85
      %s88 = sadd.s32 %s87, 1
      %p91 = scmp.eq.s32.totalorder %s32, 1
      %p92 = scmp.ne.s32.totalorder %s87, %s89
      %p93 = scmp.eq.s32.totalorder %s32, 0
      %p94 = por %p92, %p93
      %p95 = scmp.ne.s32.totalorder %s87, %s89
      %p96 = scmp.eq.s32.totalorder %s37, 1
      %p97 = por %p95, %p96
      %p98 = scmp.ne.s32.totalorder %s89, %s90
      %p99 = scmp.eq.s32.totalorder %s37, 0
      %p100 = por %p98, %p99
      %p101 = scmp.ne.s32.totalorder %s89, %s90
      %p102 = scmp.eq.s32.totalorder %s38, 1
      %p103 = por %p101, %p102
      %p105 = scmp.ne.s32.totalorder %s90, %s104
      %p106 = scmp.eq.s32.totalorder %s38, 0
      %p107 = por %p105, %p106
      %s109 = sadd.s32 %s108, 1
      %p112 = scmp.eq.s32.totalorder %s32, 1
      %p113 = scmp.ne.s32.totalorder %s108, %s110
      %p114 = scmp.eq.s32.totalorder %s32, 0
      %p115 = por %p113, %p114
      %p116 = scmp.ne.s32.totalorder %s108, %s110
      %p117 = scmp.eq.s32.totalorder %s37, 1
      %p118 = por %p116, %p117
      %p119 = scmp.ne.s32.totalorder %s110, %s111
      %p120 = scmp.eq.s32.totalorder %s37, 0
      %p121 = por %p119, %p120
      %p122 = scmp.ne.s32.totalorder %s110, %s111
      %p123 = scmp.eq.s32.totalorder %s38, 1
      %p124 = por %p122, %p123
      %p126 = scmp.ne.s32.totalorder %s111, %s125
      %p127 = scmp.eq.s32.totalorder %s38, 0
      %p128 = por %p126, %p127
      %s130 = sadd.s32 %s129, 1
      %p133 = scmp.eq.s32.totalorder %s32, 1
      %p134 = scmp.ne.s32.totalorder %s129, %s131
      %p135 = scmp.eq.s32.totalorder %s32, 0
      %p136 = por %p134, %p135
      %p137 = scmp.ne.s32.totalorder %s129, %s131
      %p138 = scmp.eq.s32.totalorder %s37, 1
      %p139 = por %p137, %p138
      %p140 = scmp.ne.s32.totalorder %s131, %s132
      %p141 = scmp.eq.s32.totalorder %s37, 0
      %p142 = por %p140, %p141
      %p143 = scmp.ne.s32.totalorder %s131, %s132
      %p144 = scmp.eq.s32.totalorder %s38, 1
      %p145 = por %p143, %p144
      %p147 = scmp.ne.s32.totalorder %s132, %s146
      %p148 = scmp.eq.s32.totalorder %s38, 0
      %p149 = por %p147, %p148
      %s151 = sadd.s32 %s150, 1
      %p154 = scmp.eq.s32.totalorder %s32, 1
      %p155 = scmp.ne.s32.totalorder %s150, %s152
      %p156 = scmp.eq.s32.totalorder %s32, 0
      %p157 = por %p155, %p156
      %p158 = scmp.ne.s32.totalorder %s150, %s152
      %p159 = scmp.eq.s32.totalorder %s37, 1
      %p160 = por %p158, %p159
      %p161 = scmp.ne.s32.totalorder %s152, %s153
      %p162 = scmp.eq.s32.totalorder %s37, 0
      %p163 = por %p161, %p162
      %p164 = scmp.ne.s32.totalorder %s152, %s153
      %p165 = scmp.eq.s32.totalorder %s38, 1
      %p166 = por %p164, %p165
      %p168 = scmp.ne.s32.totalorder %s153, %s167
      %p169 = scmp.eq.s32.totalorder %s38, 0
      %p170 = por %p168, %p169
      %s172 = sadd.s32 %s171, 1
      %p175 = scmp.eq.s32.totalorder %s32, 1
      %p176 = scmp.ne.s32.totalorder %s171, %s173
      %p177 = scmp.eq.s32.totalorder %s32, 0
      %p178 = por %p176, %p177
      %p179 = scmp.ne.s32.totalorder %s171, %s173
      %p180 = scmp.eq.s32.totalorder %s37, 1
      %p181 = por %p179, %p180
      %p182 = scmp.ne.s32.totalorder %s173, %s174
      %p183 = scmp.eq.s32.totalorder %s37, 0
      %p184 = por %p182, %p183
      %p185 = scmp.ne.s32.totalorder %s173, %s174
      %p186 = scmp.eq.s32.totalorder %s38, 1
      %p187 = por %p185, %p186
      %p189 = scmp.ne.s32.totalorder %s174, %s188
      %p190 = scmp.eq.s32.totalorder %s38, 0
      %p191 = por %p189, %p190
      %s193 = sadd.s32 %s192, 1
      %p196 = scmp.eq.s32.totalorder %s32, 1
      %p197 = scmp.ne.s32.totalorder %s192, %s194
      %p198 = scmp.eq.s32.totalorder %s32, 0
      %p199 = por %p197, %p198
      %p200 = scmp.ne.s32.totalorder %s192, %s194
      %p201 = scmp.eq.s32.totalorder %s37, 1
      %p202 = por %p200, %p201
      %p203 = scmp.ne.s32.totalorder %s194, %s195
      %p204 = scmp.eq.s32.totalorder %s37, 0
      %p205 = por %p203, %p204
      %p206 = scmp.ne.s32.totalorder %s194, %s195
      %p207 = scmp.eq.s32.totalorder %s38, 1
      %p208 = por %p206, %p207
      %p210 = scmp.ne.s32.totalorder %s195, %s209
      %p211 = scmp.eq.s32.totalorder %s38, 0
      %p212 = por %p210, %p211
      %s214 = sadd.s32 %s213, 1
      %p217 = scmp.eq.s32.totalorder %s32, 1
      %p218 = scmp.ne.s32.totalorder %s213, %s215
      %p219 = scmp.eq.s32.totalorder %s32, 0
      %p220 = por %p218, %p219
      %p221 = scmp.ne.s32.totalorder %s213, %s215
      %p222 = scmp.eq.s32.totalorder %s37, 1
      %p223 = por %p221, %p222
      %p224 = scmp.ne.s32.totalorder %s215, %s216
      %p225 = scmp.eq.s32.totalorder %s37, 0
      %p226 = por %p224, %p225
      %p227 = scmp.ne.s32.totalorder %s215, %s216
      %p228 = scmp.eq.s32.totalorder %s38, 1
      %p229 = por %p227, %p228
      %p231 = scmp.ne.s32.totalorder %s216, %s230
      %p232 = scmp.eq.s32.totalorder %s38, 0
      %p233 = por %p231, %p232
      %s235 = sadd.s32 %s234, 1
      %p238 = scmp.eq.s32.totalorder %s32, 1
      %p239 = scmp.ne.s32.totalorder %s234, %s236
      %p240 = scmp.eq.s32.totalorder %s32, 0
      %p241 = por %p239, %p240
      %p242 = scmp.ne.s32.totalorder %s234, %s236
      %p243 = scmp.eq.s32.totalorder %s37, 1
      %p244 = por %p242, %p243
      %p245 = scmp.ne.s32.totalorder %s236, %s237
      %p246 = scmp.eq.s32.totalorder %s37, 0
      %p247 = por %p245, %p246
      %p248 = scmp.ne.s32.totalorder %s236, %s237
      %p249 = scmp.eq.s32.totalorder %s38, 1
      %p250 = por %p248, %p249
      %p252 = scmp.ne.s32.totalorder %s237, %s251
      %p253 = scmp.eq.s32.totalorder %s38, 0
      %p254 = por %p252, %p253
      %s256 = sadd.s32 %s255, 1
      %p259 = scmp.eq.s32.totalorder %s32, 1
      %p260 = scmp.ne.s32.totalorder %s255, %s257
      %p261 = scmp.eq.s32.totalorder %s32, 0
      %p262 = por %p260, %p261
      %p263 = scmp.ne.s32.totalorder %s255, %s257
      %p264 = scmp.eq.s32.totalorder %s37, 1
      %p265 = por %p263, %p264
      %p266 = scmp.ne.s32.totalorder %s257, %s258
      %p267 = scmp.eq.s32.totalorder %s37, 0
      %p268 = por %p266, %p267
      %p269 = scmp.ne.s32.totalorder %s257, %s258
      %p270 = scmp.eq.s32.totalorder %s38, 1
      %p271 = por %p269, %p270
      %p273 = scmp.ne.s32.totalorder %s258, %s272
      %p274 = scmp.eq.s32.totalorder %s38, 0
      %p275 = por %p273, %p274
      %s276 = ssub.s32 %s32, %s39
      %p277 = scmp.eq.s32.totalorder %s276, 0
      %s279 = sadd.s32 %s278, 1
      %s280 = scalar_select %p277, %s278, %s279
      %p283 = pneg %p277
      %p284 = scmp.eq.s32.totalorder %s32, 1
      %p285 = por %p283, %p284
      %p286 = scmp.ne.s32.totalorder %s278, %s281
      %p287 = scmp.eq.s32.totalorder %s32, 0
      %p288 = por %p286, %p287
      %p289 = scmp.ne.s32.totalorder %s278, %s281
      %p290 = scmp.eq.s32.totalorder %s37, 1
      %p291 = por %p289, %p290
      %p292 = scmp.ne.s32.totalorder %s281, %s282
      %p293 = scmp.eq.s32.totalorder %s37, 0
      %p294 = por %p292, %p293
      %p295 = scmp.ne.s32.totalorder %s281, %s282
      %p296 = scmp.eq.s32.totalorder %s38, 1
      %p297 = por %p295, %p296
      %p299 = scmp.ne.s32.totalorder %s282, %s298
      %p300 = scmp.eq.s32.totalorder %s38, 0
      %p301 = por %p299, %p300
      %s302 = ssub.s32 %s32, %s39
      %p303 = scmp.eq.s32.totalorder %s302, 0
      %s305 = sadd.s32 %s304, 1
      %s306 = scalar_select %p303, %s304, %s305
      %p309 = pneg %p303
      %p310 = scmp.eq.s32.totalorder %s32, 1
      %p311 = por %p309, %p310
      %p312 = scmp.ne.s32.totalorder %s304, %s307
      %p313 = scmp.eq.s32.totalorder %s32, 0
      %p314 = por %p312, %p313
      %p315 = scmp.ne.s32.totalorder %s304, %s307
      %p316 = scmp.eq.s32.totalorder %s37, 1
      %p317 = por %p315, %p316
      %p318 = scmp.ne.s32.totalorder %s307, %s308
      %p319 = scmp.eq.s32.totalorder %s37, 0
      %p320 = por %p318, %p319
      %p321 = scmp.ne.s32.totalorder %s307, %s308
      %p322 = scmp.eq.s32.totalorder %s38, 1
      %p323 = por %p321, %p322
      %p325 = scmp.ne.s32.totalorder %s308, %s324
      %p326 = scmp.eq.s32.totalorder %s38, 0
      %p327 = por %p325, %p326
      %s328 = ssub.s32 %s32, %s39
      %p329 = scmp.eq.s32.totalorder %s328, 0
      %s331 = sadd.s32 %s330, 1
      %s332 = scalar_select %p329, %s330, %s331
      %p335 = pneg %p329
      %p336 = scmp.eq.s32.totalorder %s32, 1
      %p337 = por %p335, %p336
      %p338 = scmp.ne.s32.totalorder %s330, %s333
      %p339 = scmp.eq.s32.totalorder %s32, 0
      %p340 = por %p338, %p339
      %p341 = scmp.ne.s32.totalorder %s330, %s333
      %p342 = scmp.eq.s32.totalorder %s37, 1
      %p343 = por %p341, %p342
      %p344 = scmp.ne.s32.totalorder %s333, %s334
      %p345 = scmp.eq.s32.totalorder %s37, 0
      %p346 = por %p344, %p345
      %p347 = scmp.ne.s32.totalorder %s333, %s334
      %p348 = scmp.eq.s32.totalorder %s38, 1
      %p349 = por %p347, %p348
      %p351 = scmp.ne.s32.totalorder %s334, %s350
      %p352 = scmp.eq.s32.totalorder %s38, 0
      %p353 = por %p351, %p352
      %p354 = scmp.le.s32.totalorder 1, %s32
      %p355 = scmp.lt.s32.totalorder %s32, 3
      %p356 = pnand %p354, %p355
      %p357 = pneg %p356
      // Predicated region
      $region9: #{tpu_custom_call.1} parent=5 // pred_check
        _
      $region10: #{tpu_custom_call.1} parent=5 // pred_check_branch
        %359 = sbr.rel (%p356) target = $region12
      $region11: #{tpu_custom_call.1} parent=5 // pred_region
        %s360 = ssub.s32 %s32, 1
        // Predicated region
        $region13: #{tpu_custom_call.1} parent=11 // pred_check
          %p361 = pneg %p79
        $region14: #{tpu_custom_call.1} parent=11 // pred_check_branch
          %363 = sbr.rel (%p361) target = $region16
        $region15: #{tpu_custom_call.1} parent=11 // pred_region
          %s365 = ssub.s32 1024, 1024
          %366 = vsyncadd [#allocation6], %s365
          %s367 = sshll.u32 [#allocation5], 4
          %s368 = int_to_ptr.vmem [resolvable:$true] %s367
          %373 = dma.hbm_to_vmem [thread:$0]  %s1, 1024, %s368, [#allocation6], 64, 64, 4
        $region16: #{tpu_custom_call.1} parent=11 // pred_fallthru
          _
        // Predicated region
        $region17: #{tpu_custom_call.1} parent=11 // pred_check
          %p374 = pneg %p100
        $region18: #{tpu_custom_call.1} parent=11 // pred_check_branch
          %376 = sbr.rel (%p374) target = $region20
        $region19: #{tpu_custom_call.1} parent=11 // pred_region
          _
        $region20: #{tpu_custom_call.1} parent=11 // pred_fallthru
          _
        // Predicated region
        $region21: #{tpu_custom_call.1} parent=11 // pred_check
          %p377 = pneg %p121
        $region22: #{tpu_custom_call.1} parent=11 // pred_check_branch
          %379 = sbr.rel (%p377) target = $region24
        $region23: #{tpu_custom_call.1} parent=11 // pred_region
          %s381 = ssub.s32 1024, 1024
          %382 = vsyncadd [#allocation6], %s381
          %s383 = sshll.u32 [#allocation7], 4
          %s384 = int_to_ptr.vmem [resolvable:$true] %s383
          %389 = dma.hbm_to_vmem [thread:$0]  %s3, 1024, %s384, [#allocation6], 64, 64, 4
        $region24: #{tpu_custom_call.1} parent=11 // pred_fallthru
          _
        // Predicated region
        $region25: #{tpu_custom_call.1} parent=11 // pred_check
          %p390 = pneg %p142
        $region26: #{tpu_custom_call.1} parent=11 // pred_check_branch
          %392 = sbr.rel (%p390) target = $region28
        $region27: #{tpu_custom_call.1} parent=11 // pred_region
          _
        $region28: #{tpu_custom_call.1} parent=11 // pred_fallthru
          _
        // Predicated region
        $region29: #{tpu_custom_call.1} parent=11 // pred_check
          %p393 = pneg %p163
        $region30: #{tpu_custom_call.1} parent=11 // pred_check_branch
          %395 = sbr.rel (%p393) target = $region32
        $region31: #{tpu_custom_call.1} parent=11 // pred_region
          %s397 = ssub.s32 1024, 1024
          %398 = vsyncadd [#allocation9], %s397
          %s399 = sshll.u32 [#allocation8], 4
          %s400 = int_to_ptr.vmem [resolvable:$true] %s399
          %405 = dma.hbm_to_vmem [thread:$0]  %s5, 1024, %s400, [#allocation9], 64, 64, 4
        $region32: #{tpu_custom_call.1} parent=11 // pred_fallthru
          _
        // Predicated region
        $region33: #{tpu_custom_call.1} parent=11 // pred_check
          %p406 = pneg %p184
        $region34: #{tpu_custom_call.1} parent=11 // pred_check_branch
          %408 = sbr.rel (%p406) target = $region36
        $region35: #{tpu_custom_call.1} parent=11 // pred_region
          _
        $region36: #{tpu_custom_call.1} parent=11 // pred_fallthru
          _
        // Predicated region
        $region37: #{tpu_custom_call.1} parent=11 // pred_check
          %p409 = pneg %p205
        $region38: #{tpu_custom_call.1} parent=11 // pred_check_branch
          %411 = sbr.rel (%p409) target = $region40
        $region39: #{tpu_custom_call.1} parent=11 // pred_region
          %s413 = ssub.s32 1024, 1024
          %414 = vsyncadd [#allocation9], %s413
          %s415 = sshll.u32 [#allocation10], 4
          %s416 = int_to_ptr.vmem [resolvable:$true] %s415
          %421 = dma.hbm_to_vmem [thread:$0]  %s7, 1024, %s416, [#allocation9], 64, 64, 4
        $region40: #{tpu_custom_call.1} parent=11 // pred_fallthru
          _
        // Predicated region
        $region41: #{tpu_custom_call.1} parent=11 // pred_check
          %p422 = pneg %p226
        $region42: #{tpu_custom_call.1} parent=11 // pred_check_branch
          %424 = sbr.rel (%p422) target = $region44
        $region43: #{tpu_custom_call.1} parent=11 // pred_region
          _
        $region44: #{tpu_custom_call.1} parent=11 // pred_fallthru
          _
        // Predicated region
        $region45: #{tpu_custom_call.1} parent=11 // pred_check
          %p425 = pneg %p247
        $region46: #{tpu_custom_call.1} parent=11 // pred_check_branch
          %427 = sbr.rel (%p425) target = $region48
        $region47: #{tpu_custom_call.1} parent=11 // pred_region
          %s429 = ssub.s32 1024, 1024
          %430 = vsyncadd [#allocation12], %s429
          %s431 = sshll.u32 [#allocation11], 4
          %s432 = int_to_ptr.vmem [resolvable:$true] %s431
          %437 = dma.hbm_to_vmem [thread:$0]  %s9, 1024, %s432, [#allocation12], 64, 64, 4
        $region48: #{tpu_custom_call.1} parent=11 // pred_fallthru
          _
        // Predicated region
        $region49: #{tpu_custom_call.1} parent=11 // pred_check
          %p438 = pneg %p268
        $region50: #{tpu_custom_call.1} parent=11 // pred_check_branch
          %440 = sbr.rel (%p438) target = $region52
        $region51: #{tpu_custom_call.1} parent=11 // pred_region
          _
        $region52: #{tpu_custom_call.1} parent=11 // pred_fallthru
          _
      $region12: #{tpu_custom_call.1} parent=5 // pred_fallthru
        _
      %p441 = scmp.lt.s32.totalorder %s32, 2
      // Predicated region
      $region53: #{tpu_custom_call.1} parent=5 // pred_check
        %p442 = pneg %p441
      $region54: #{tpu_custom_call.1} parent=5 // pred_check_branch
        %444 = sbr.rel (%p442) target = $region56
      $region55: #{tpu_custom_call.1} parent=5 // pred_region
        // Predicated region
        $region57: #{tpu_custom_call.1} parent=55 // pred_check
          %p445 = pneg %p52
        $region58: #{tpu_custom_call.1} parent=55 // pred_check_branch
          %447 = sbr.rel (%p445) target = $region60
        $region59: #{tpu_custom_call.1} parent=55 // pred_region
          %s448 = sand.u32 %s42, 1
          %s449 = scalar_lea.sflag [#allocation3], %s448
          %s450 = sand.u32 %s42, 1
          %s451 = smul.addr %s450, 16
          %s452 = scalar_lea.vmem [#allocation2], %s451
          %s453 = smul.u32 4, %s32
          %s455 = ssub.s32 256, 256
          %456 = vsyncadd %s449, %s455
          %s457 = smul.addr %s453, 64
          %s458 = scalar_lea.hbm %s0, %s457
          %s459 = sshll.u32 %s452, 4
          %s460 = int_to_ptr.vmem [resolvable:$true] %s459
          %465 = dma.hbm_to_vmem [thread:$0]  %s458, 256, %s460, %s449, 64, 64, 4
        $region60: #{tpu_custom_call.1} parent=55 // pred_fallthru
          _
      $region56: #{tpu_custom_call.1} parent=5 // pred_fallthru
        _
      %p466 = scmp.le.s32.totalorder 1, %s32
      %p467 = scmp.lt.s32.totalorder %s32, 3
      %p468 = pnand %p466, %p467
      %p469 = pneg %p468
      // Predicated region
      $region61: #{tpu_custom_call.1} parent=5 // pred_check
        _
      $region62: #{tpu_custom_call.1} parent=5 // pred_check_branch
        %471 = sbr.rel (%p468) target = $region64
      $region63: #{tpu_custom_call.1} parent=5 // pred_region
        %s472 = ssub.s32 %s32, 1
        %s473 = sand.u32 %s45, 1
        %s474 = scalar_lea.sflag [#allocation3], %s473
        %s475 = sand.u32 %s45, 1
        %s476 = smul.addr %s475, 16
        %s477 = scalar_lea.vmem [#allocation2], %s476
        // Predicated region
        $region65: #{tpu_custom_call.1} parent=63 // pred_check
          %p478 = pneg %p58
        $region66: #{tpu_custom_call.1} parent=63 // pred_check_branch
          %480 = sbr.rel (%p478) target = $region68
        $region67: #{tpu_custom_call.1} parent=63 // pred_region
          %481 = dma.done %s474, 256
        $region68: #{tpu_custom_call.1} parent=63 // pred_fallthru
          _
        // Predicated region
        $region69: #{tpu_custom_call.1} parent=63 // pred_check
          %p482 = pneg %p79
        $region70: #{tpu_custom_call.1} parent=63 // pred_check_branch
          %484 = sbr.rel (%p482) target = $region72
        $region71: #{tpu_custom_call.1} parent=63 // pred_region
          %485 = dma.done [#allocation6], 1024
        $region72: #{tpu_custom_call.1} parent=63 // pred_fallthru
          _
        // Predicated region
        $region73: #{tpu_custom_call.1} parent=63 // pred_check
          %p486 = pneg %p121
        $region74: #{tpu_custom_call.1} parent=63 // pred_check_branch
          %488 = sbr.rel (%p486) target = $region76
        $region75: #{tpu_custom_call.1} parent=63 // pred_region
          %489 = dma.done [#allocation6], 1024
        $region76: #{tpu_custom_call.1} parent=63 // pred_fallthru
          _
        // Predicated region
        $region77: #{tpu_custom_call.1} parent=63 // pred_check
          %p490 = pneg %p163
        $region78: #{tpu_custom_call.1} parent=63 // pred_check_branch
          %492 = sbr.rel (%p490) target = $region80
        $region79: #{tpu_custom_call.1} parent=63 // pred_region
          %493 = dma.done [#allocation9], 1024
        $region80: #{tpu_custom_call.1} parent=63 // pred_fallthru
          _
        // Predicated region
        $region81: #{tpu_custom_call.1} parent=63 // pred_check
          %p494 = pneg %p205
        $region82: #{tpu_custom_call.1} parent=63 // pred_check_branch
          %496 = sbr.rel (%p494) target = $region84
        $region83: #{tpu_custom_call.1} parent=63 // pred_region
          %497 = dma.done [#allocation9], 1024
        $region84: #{tpu_custom_call.1} parent=63 // pred_fallthru
          _
        // Predicated region
        $region85: #{tpu_custom_call.1} parent=63 // pred_check
          %p498 = pneg %p247
        $region86: #{tpu_custom_call.1} parent=63 // pred_check_branch
          %500 = sbr.rel (%p498) target = $region88
        $region87: #{tpu_custom_call.1} parent=63 // pred_region
          %501 = dma.done [#allocation12], 1024
        $region88: #{tpu_custom_call.1} parent=63 // pred_fallthru
          _
        %s502 = sand.u32 %s45, 1
        %s503 = scalar_lea.sflag [#allocation3], %s502
        %s504 = sand.u32 %s45, 1
        %s505 = smul.addr %s504, 16
        %s506 = scalar_lea.vmem [#allocation2], %s505
        %p507 = pneg %p58
        %p508 = pneg %p55
        %p509 = pneg %p79
        %p510 = pneg %p76
        %p511 = pneg %p100
        %p512 = pneg %p97
        %p513 = pneg %p121
        %p514 = pneg %p118
        %p515 = pneg %p142
        %p516 = pneg %p139
        %p517 = pneg %p163
        %p518 = pneg %p160
        %p519 = pneg %p184
        %p520 = pneg %p181
        %p521 = pneg %p205
        %p522 = pneg %p202
        %p523 = pneg %p226
        %p524 = pneg %p223
        %p525 = pneg %p247
        %p526 = pneg %p244
        %p527 = pneg %p268
        %p528 = pneg %p265
        %p529 = pneg %p294
        %p530 = pneg %p291
        %s531 = sand.u32 %s281, 1
        %s532 = scalar_lea.sflag [#allocation4], %s531
        %s533 = sand.u32 %s281, 1
        %s534 = smul.addr %s533, 32
        %s535 = scalar_lea.vmem [#allocation13], %s534
        %p536 = pneg %p320
        %p537 = pneg %p317
        %s538 = sand.u32 %s37, 1
        %s539 = scalar_lea.sflag [#allocation15], %s538
        %s540 = sand.u32 %s307, 1
        %s541 = smul.addr %s540, 32
        %s542 = scalar_lea.vmem [#allocation14], %s541
        %p543 = pneg %p346
        %p544 = pneg %p343
        %s545 = sand.u32 %s37, 1
        %s546 = scalar_lea.sflag [#allocation15], %s545
        %s547 = sand.u32 %s333, 1
        %s548 = smul.addr %s547, 32
        %s549 = scalar_lea.vmem [#allocation16], %s548
        %s550 = smul.u32 4, %s37
        %s551 = smul.u32 4, %s37
        %s552 = smul.u32 4, %s37
        %s553 = smul.u32 4, %s37
        %v555 = vld [vmem:[%s477] sm:$0xf]
        %v556 = vld [vmem:[%s477 + $0x4] sm:$0xf]
        %v557 = vld [vmem:[%s477 + $0x8] sm:$0xf]
        %v558 = vld [vmem:[%s477 + $0xc] sm:$0xf]
        %v559 = vld [vmem:[#allocation5] sm:$0xf]
        %v560 = vld [vmem:[#allocation5 + $0x4] sm:$0xf]
        %v561 = vld [vmem:[#allocation5 + $0x8] sm:$0xf]
        %v562 = vld [vmem:[#allocation5 + $0xc] sm:$0xf]
        %v563 = vld [vmem:[#allocation5 + $0x10] sm:$0xf]
        %v564 = vld [vmem:[#allocation5 + $0x14] sm:$0xf]
        %v565 = vld [vmem:[#allocation5 + $0x18] sm:$0xf]
        %v566 = vld [vmem:[#allocation5 + $0x1c] sm:$0xf]
        %v567 = vld [vmem:[#allocation5 + $0x20] sm:$0xf]
        %v568 = vld [vmem:[#allocation5 + $0x24] sm:$0xf]
        %v569 = vld [vmem:[#allocation5 + $0x28] sm:$0xf]
        %v570 = vld [vmem:[#allocation5 + $0x2c] sm:$0xf]
        %v571 = vld [vmem:[#allocation5 + $0x30] sm:$0xf]
        %v572 = vld [vmem:[#allocation5 + $0x34] sm:$0xf]
        %v573 = vld [vmem:[#allocation5 + $0x38] sm:$0xf]
        %v574 = vld [vmem:[#allocation5 + $0x3c] sm:$0xf]
        %v575 = vld [vmem:[%s2] sm:$0x1]
        %v577 = vlaneseq
        %v578 = vshrl.u32 %v577, 7
        %v579 = vsub.s32 0, %v578
        %v580 = vrot.slane %v575, %v579
        %v586 = vunpack.c.l.b16 %v555
        %v587 = vunpack.c.l.b16 %v556
        %v588 = vunpack.c.l.b16 %v557
        %v589 = vunpack.c.l.b16 %v558
        %v590 = vpack.c.b16 %v587, %v586
        %v591 = vpack.c.b16 %v589, %v588
        %v610 = vunpack.c.l.b16 %v559
        %v611 = vunpack.c.l.b16 %v560
        %v612 = vunpack.c.l.b16 %v561
        %v613 = vunpack.c.l.b16 %v562
        %v614 = vunpack.c.l.b16 %v563
        %v615 = vunpack.c.l.b16 %v564
        %v616 = vunpack.c.l.b16 %v565
        %v617 = vunpack.c.l.b16 %v566
        %v618 = vunpack.c.l.b16 %v567
        %v619 = vunpack.c.l.b16 %v568
        %v620 = vunpack.c.l.b16 %v569
        %v621 = vunpack.c.l.b16 %v570
        %v622 = vunpack.c.l.b16 %v571
        %v623 = vunpack.c.l.b16 %v572
        %v624 = vunpack.c.l.b16 %v573
        %v625 = vunpack.c.l.b16 %v574
        %v626 = vpack.c.b16 %v611, %v610
        %v627 = vpack.c.b16 %v613, %v612
        %v628 = vpack.c.b16 %v615, %v614
        %v629 = vpack.c.b16 %v617, %v616
        %v630 = vpack.c.b16 %v619, %v618
        %v631 = vpack.c.b16 %v621, %v620
        %v632 = vpack.c.b16 %v623, %v622
        %v633 = vpack.c.b16 %v625, %v624
        %642 = vmatprep.subr.bf16.mxu0 0
        %643 = vmatpush1.bf16.msra.mxu0 %v633
        %644 = vmatprep.subr.bf16.mxu0 0
        %645 = vmatpush1.bf16.msra.mxu0 %v632
        %646 = vmatprep.subr.bf16.mxu0 0
        %647 = vmatpush1.bf16.msra.mxu0 %v631
        %648 = vmatprep.subr.bf16.mxu0 0
        %649 = vmatpush1.bf16.msra.mxu0 %v630
        %650 = vmatprep.subr.bf16.mxu0 0
        %651 = vmatpush1.bf16.msra.mxu0 %v629
        %652 = vmatprep.subr.bf16.mxu0 0
        %653 = vmatpush1.bf16.msra.mxu0 %v628
        %654 = vmatprep.subr.bf16.mxu0 0
        %655 = vmatpush1.bf16.msra.mxu0 %v627
        %656 = vmatprep.subr.bf16.mxu0 0
        %657 = vmatpush1.bf16.msra.mxu0 %v626
        %658 = vmatprep.subr.bf16.mxu0 0
        %659 = vmatpush2.bf16.msra.mxu0 0
        %660 = vmatprep.subr.bf16.mxu0 0
        %661 = vmatpush2.bf16.msra.mxu0 0
        %662 = vmatprep.subr.bf16.mxu0 0
        %663 = vmatpush2.bf16.msra.mxu0 0
        %664 = vmatprep.subr.bf16.mxu0 0
        %665 = vmatpush2.bf16.msra.mxu0 0
        %666 = vmatprep.subr.bf16.mxu0 0
        %667 = vmatpush2.bf16.msra.mxu0 0
        %668 = vmatprep.subr.bf16.mxu0 0
        %669 = vmatpush2.bf16.msra.mxu0 0
        %670 = vmatprep.subr.bf16.mxu0 0
        %671 = vmatpush2.bf16.msra.mxu0 0
        %672 = vmatprep.subr.bf16.mxu0 0
        %673 = vmatpush2.bf16.msra.mxu0 0
        %674 = vmatprep.mubr.bf16.mxu0 0
        %675 = vmatmul.mubr.bf16.gmra.mxu0 %v590
        %v676 = vpop.f32.mrf.mxu0
        %v677 = vadd.f32 %v580, %v676
        %v678 = vpop.f32.mrf.mxu0
        %v679 = vpop.f32.mrf.mxu0
        %v680 = vadd.f32 %v580, %v679
        %v681 = vpop.f32.mrf.mxu0
        %682 = vmatprep.mubr.bf16.mxu0 0
        %683 = vmatmul.mubr.bf16.gmra.mxu0 %v591
        %v684 = vpop.f32.mrf.mxu0
        %v685 = vadd.f32 %v580, %v684
        %v686 = vpop.f32.mrf.mxu0
        %v687 = vpop.f32.mrf.mxu0
        %v688 = vadd.f32 %v580, %v687
        %v689 = vpop.f32.mrf.mxu0
        %690 = vdwg.mxu0
        %v691 = vmax.f32 %v677, 0.0
        %v692 = vmax.f32 %v680, 0.0
        %v693 = vmax.f32 %v685, 0.0
        %v694 = vmax.f32 %v688, 0.0
        %v695 = vpack.c.bf16 %v692, %v691
        %v696 = vpack.c.bf16 %v694, %v693
        %v697 = vld [vmem:[#allocation7] sm:$0xf]
        %v698 = vld [vmem:[#allocation7 + $0x4] sm:$0xf]
        %v699 = vld [vmem:[#allocation7 + $0x8] sm:$0xf]
        %v700 = vld [vmem:[#allocation7 + $0xc] sm:$0xf]
        %v701 = vld [vmem:[#allocation7 + $0x10] sm:$0xf]
        %v702 = vld [vmem:[#allocation7 + $0x14] sm:$0xf]
        %v703 = vld [vmem:[#allocation7 + $0x18] sm:$0xf]
        %v704 = vld [vmem:[#allocation7 + $0x1c] sm:$0xf]
        %v705 = vld [vmem:[#allocation7 + $0x20] sm:$0xf]
        %v706 = vld [vmem:[#allocation7 + $0x24] sm:$0xf]
        %v707 = vld [vmem:[#allocation7 + $0x28] sm:$0xf]
        %v708 = vld [vmem:[#allocation7 + $0x2c] sm:$0xf]
        %v709 = vld [vmem:[#allocation7 + $0x30] sm:$0xf]
        %v710 = vld [vmem:[#allocation7 + $0x34] sm:$0xf]
        %v711 = vld [vmem:[#allocation7 + $0x38] sm:$0xf]
        %v712 = vld [vmem:[#allocation7 + $0x3c] sm:$0xf]
        %v713 = vld [vmem:[%s4] sm:$0x1]
        %v715 = vlaneseq
        %v716 = vshrl.u32 %v715, 7
        %v717 = vsub.s32 0, %v716
        %v718 = vrot.slane %v713, %v717
        %v736 = vunpack.c.l.b16 %v697
        %v737 = vunpack.c.l.b16 %v698
        %v738 = vunpack.c.l.b16 %v699
        %v739 = vunpack.c.l.b16 %v700
        %v740 = vunpack.c.l.b16 %v701
        %v741 = vunpack.c.l.b16 %v702
        %v742 = vunpack.c.l.b16 %v703
        %v743 = vunpack.c.l.b16 %v704
        %v744 = vunpack.c.l.b16 %v705
        %v745 = vunpack.c.l.b16 %v706
        %v746 = vunpack.c.l.b16 %v707
        %v747 = vunpack.c.l.b16 %v708
        %v748 = vunpack.c.l.b16 %v709
        %v749 = vunpack.c.l.b16 %v710
        %v750 = vunpack.c.l.b16 %v711
        %v751 = vunpack.c.l.b16 %v712
        %v752 = vpack.c.b16 %v737, %v736
        %v753 = vpack.c.b16 %v739, %v738
        %v754 = vpack.c.b16 %v741, %v740
        %v755 = vpack.c.b16 %v743, %v742
        %v756 = vpack.c.b16 %v745, %v744
        %v757 = vpack.c.b16 %v747, %v746
        %v758 = vpack.c.b16 %v749, %v748
        %v759 = vpack.c.b16 %v751, %v750
        %768 = vmatprep.subr.bf16.mxu0 0
        %769 = vmatpush1.bf16.msra.mxu0 %v759
        %770 = vmatprep.subr.bf16.mxu0 0
        %771 = vmatpush1.bf16.msra.mxu0 %v758
        %772 = vmatprep.subr.bf16.mxu0 0
        %773 = vmatpush1.bf16.msra.mxu0 %v757
        %774 = vmatprep.subr.bf16.mxu0 0
        %775 = vmatpush1.bf16.msra.mxu0 %v756
        %776 = vmatprep.subr.bf16.mxu0 0
        %777 = vmatpush1.bf16.msra.mxu0 %v755
        %778 = vmatprep.subr.bf16.mxu0 0
        %779 = vmatpush1.bf16.msra.mxu0 %v754
        %780 = vmatprep.subr.bf16.mxu0 0
        %781 = vmatpush1.bf16.msra.mxu0 %v753
        %782 = vmatprep.subr.bf16.mxu0 0
        %783 = vmatpush1.bf16.msra.mxu0 %v752
        %784 = vmatprep.subr.bf16.mxu0 0
        %785 = vmatpush2.bf16.msra.mxu0 0
        %786 = vmatprep.subr.bf16.mxu0 0
        %787 = vmatpush2.bf16.msra.mxu0 0
        %788 = vmatprep.subr.bf16.mxu0 0
        %789 = vmatpush2.bf16.msra.mxu0 0
        %790 = vmatprep.subr.bf16.mxu0 0
        %791 = vmatpush2.bf16.msra.mxu0 0
        %792 = vmatprep.subr.bf16.mxu0 0
        %793 = vmatpush2.bf16.msra.mxu0 0
        %794 = vmatprep.subr.bf16.mxu0 0
        %795 = vmatpush2.bf16.msra.mxu0 0
        %796 = vmatprep.subr.bf16.mxu0 0
        %797 = vmatpush2.bf16.msra.mxu0 0
        %798 = vmatprep.subr.bf16.mxu0 0
        %799 = vmatpush2.bf16.msra.mxu0 0
        %800 = vmatprep.mubr.bf16.mxu0 0
        %801 = vmatmul.mubr.bf16.gmra.mxu0 %v695
        %v802 = vpop.f32.mrf.mxu0
        %v803 = vadd.f32 %v718, %v802
        %v804 = vpop.f32.mrf.mxu0
        %v805 = vpop.f32.mrf.mxu0
        %v806 = vadd.f32 %v718, %v805
        %v807 = vpop.f32.mrf.mxu0
        %808 = vmatprep.mubr.bf16.mxu0 0
        %809 = vmatmul.mubr.bf16.gmra.mxu0 %v696
        %v810 = vpop.f32.mrf.mxu0
        %v811 = vadd.f32 %v718, %v810
        %v812 = vpop.f32.mrf.mxu0
        %v813 = vpop.f32.mrf.mxu0
        %v814 = vadd.f32 %v718, %v813
        %v815 = vpop.f32.mrf.mxu0
        %816 = vdwg.mxu0
        %v817 = vmax.f32 %v803, 0.0
        %v818 = vmax.f32 %v806, 0.0
        %v819 = vmax.f32 %v811, 0.0
        %v820 = vmax.f32 %v814, 0.0
        %821 = vst [vmem:[%s535] sm:$0xff] %v817
        %822 = vst [vmem:[%s535 + $0x8] sm:$0xff] %v818
        %823 = vst [vmem:[%s535 + $0x10] sm:$0xff] %v819
        %824 = vst [vmem:[%s535 + $0x18] sm:$0xff] %v820
        %v825 = vpack.c.bf16 %v818, %v817
        %v826 = vpack.c.bf16 %v820, %v819
        %v827 = vld [vmem:[#allocation8] sm:$0xf]
        %v828 = vld [vmem:[#allocation8 + $0x4] sm:$0xf]
        %v829 = vld [vmem:[#allocation8 + $0x8] sm:$0xf]
        %v830 = vld [vmem:[#allocation8 + $0xc] sm:$0xf]
        %v831 = vld [vmem:[#allocation8 + $0x10] sm:$0xf]
        %v832 = vld [vmem:[#allocation8 + $0x14] sm:$0xf]
        %v833 = vld [vmem:[#allocation8 + $0x18] sm:$0xf]
        %v834 = vld [vmem:[#allocation8 + $0x1c] sm:$0xf]
        %v835 = vld [vmem:[#allocation8 + $0x20] sm:$0xf]
        %v836 = vld [vmem:[#allocation8 + $0x24] sm:$0xf]
        %v837 = vld [vmem:[#allocation8 + $0x28] sm:$0xf]
        %v838 = vld [vmem:[#allocation8 + $0x2c] sm:$0xf]
        %v839 = vld [vmem:[#allocation8 + $0x30] sm:$0xf]
        %v840 = vld [vmem:[#allocation8 + $0x34] sm:$0xf]
        %v841 = vld [vmem:[#allocation8 + $0x38] sm:$0xf]
        %v842 = vld [vmem:[#allocation8 + $0x3c] sm:$0xf]
        %v843 = vld [vmem:[%s6] sm:$0x1]
        %v845 = vlaneseq
        %v846 = vshrl.u32 %v845, 7
        %v847 = vsub.s32 0, %v846
        %v848 = vrot.slane %v843, %v847
        %v866 = vunpack.c.l.b16 %v827
        %v867 = vunpack.c.l.b16 %v828
        %v868 = vunpack.c.l.b16 %v829
        %v869 = vunpack.c.l.b16 %v830
        %v870 = vunpack.c.l.b16 %v831
        %v871 = vunpack.c.l.b16 %v832
        %v872 = vunpack.c.l.b16 %v833
        %v873 = vunpack.c.l.b16 %v834
        %v874 = vunpack.c.l.b16 %v835
        %v875 = vunpack.c.l.b16 %v836
        %v876 = vunpack.c.l.b16 %v837
        %v877 = vunpack.c.l.b16 %v838
        %v878 = vunpack.c.l.b16 %v839
        %v879 = vunpack.c.l.b16 %v840
        %v880 = vunpack.c.l.b16 %v841
        %v881 = vunpack.c.l.b16 %v842
        %v882 = vpack.c.b16 %v867, %v866
        %v883 = vpack.c.b16 %v869, %v868
        %v884 = vpack.c.b16 %v871, %v870
        %v885 = vpack.c.b16 %v873, %v872
        %v886 = vpack.c.b16 %v875, %v874
        %v887 = vpack.c.b16 %v877, %v876
        %v888 = vpack.c.b16 %v879, %v878
        %v889 = vpack.c.b16 %v881, %v880
        %898 = vmatprep.subr.bf16.mxu0 0
        %899 = vmatpush1.bf16.msra.mxu0 %v889
        %900 = vmatprep.subr.bf16.mxu0 0
        %901 = vmatpush1.bf16.msra.mxu0 %v888
        %902 = vmatprep.subr.bf16.mxu0 0
        %903 = vmatpush1.bf16.msra.mxu0 %v887
        %904 = vmatprep.subr.bf16.mxu0 0
        %905 = vmatpush1.bf16.msra.mxu0 %v886
        %906 = vmatprep.subr.bf16.mxu0 0
        %907 = vmatpush1.bf16.msra.mxu0 %v885
        %908 = vmatprep.subr.bf16.mxu0 0
        %909 = vmatpush1.bf16.msra.mxu0 %v884
        %910 = vmatprep.subr.bf16.mxu0 0
        %911 = vmatpush1.bf16.msra.mxu0 %v883
        %912 = vmatprep.subr.bf16.mxu0 0
        %913 = vmatpush1.bf16.msra.mxu0 %v882
        %914 = vmatprep.subr.bf16.mxu0 0
        %915 = vmatpush2.bf16.msra.mxu0 0
        %916 = vmatprep.subr.bf16.mxu0 0
        %917 = vmatpush2.bf16.msra.mxu0 0
        %918 = vmatprep.subr.bf16.mxu0 0
        %919 = vmatpush2.bf16.msra.mxu0 0
        %920 = vmatprep.subr.bf16.mxu0 0
        %921 = vmatpush2.bf16.msra.mxu0 0
        %922 = vmatprep.subr.bf16.mxu0 0
        %923 = vmatpush2.bf16.msra.mxu0 0
        %924 = vmatprep.subr.bf16.mxu0 0
        %925 = vmatpush2.bf16.msra.mxu0 0
        %926 = vmatprep.subr.bf16.mxu0 0
        %927 = vmatpush2.bf16.msra.mxu0 0
        %928 = vmatprep.subr.bf16.mxu0 0
        %929 = vmatpush2.bf16.msra.mxu0 0
        %930 = vmatprep.mubr.bf16.mxu0 0
        %931 = vmatmul.mubr.bf16.gmra.mxu0 %v825
        %v932 = vpop.f32.mrf.mxu0
        %v933 = vadd.f32 %v848, %v932
        %v934 = vpop.f32.mrf.mxu0
        %v935 = vpop.f32.mrf.mxu0
        %v936 = vadd.f32 %v848, %v935
        %v937 = vpop.f32.mrf.mxu0
        %938 = vmatprep.mubr.bf16.mxu0 0
        %939 = vmatmul.mubr.bf16.gmra.mxu0 %v826
        %v940 = vpop.f32.mrf.mxu0
        %v941 = vadd.f32 %v848, %v940
        %v942 = vpop.f32.mrf.mxu0
        %v943 = vpop.f32.mrf.mxu0
        %v944 = vadd.f32 %v848, %v943
        %v945 = vpop.f32.mrf.mxu0
        %946 = vdwg.mxu0
        %v947 = vmax.f32 %v933, 0.0
        %v948 = vmax.f32 %v936, 0.0
        %v949 = vmax.f32 %v941, 0.0
        %v950 = vmax.f32 %v944, 0.0
        %v951 = vpack.c.bf16 %v948, %v947
        %v952 = vpack.c.bf16 %v950, %v949
        %v953 = vld [vmem:[#allocation10] sm:$0xf]
        %v954 = vld [vmem:[#allocation10 + $0x4] sm:$0xf]
        %v955 = vld [vmem:[#allocation10 + $0x8] sm:$0xf]
        %v956 = vld [vmem:[#allocation10 + $0xc] sm:$0xf]
        %v957 = vld [vmem:[#allocation10 + $0x10] sm:$0xf]
        %v958 = vld [vmem:[#allocation10 + $0x14] sm:$0xf]
        %v959 = vld [vmem:[#allocation10 + $0x18] sm:$0xf]
        %v960 = vld [vmem:[#allocation10 + $0x1c] sm:$0xf]
        %v961 = vld [vmem:[#allocation10 + $0x20] sm:$0xf]
        %v962 = vld [vmem:[#allocation10 + $0x24] sm:$0xf]
        %v963 = vld [vmem:[#allocation10 + $0x28] sm:$0xf]
        %v964 = vld [vmem:[#allocation10 + $0x2c] sm:$0xf]
        %v965 = vld [vmem:[#allocation10 + $0x30] sm:$0xf]
        %v966 = vld [vmem:[#allocation10 + $0x34] sm:$0xf]
        %v967 = vld [vmem:[#allocation10 + $0x38] sm:$0xf]
        %v968 = vld [vmem:[#allocation10 + $0x3c] sm:$0xf]
        %v969 = vld [vmem:[%s8] sm:$0x1]
        %v971 = vlaneseq
        %v972 = vshrl.u32 %v971, 7
        %v973 = vsub.s32 0, %v972
        %v974 = vrot.slane %v969, %v973
        %v992 = vunpack.c.l.b16 %v953
        %v993 = vunpack.c.l.b16 %v954
        %v994 = vunpack.c.l.b16 %v955
        %v995 = vunpack.c.l.b16 %v956
        %v996 = vunpack.c.l.b16 %v957
        %v997 = vunpack.c.l.b16 %v958
        %v998 = vunpack.c.l.b16 %v959
        %v999 = vunpack.c.l.b16 %v960
        %v1000 = vunpack.c.l.b16 %v961
        %v1001 = vunpack.c.l.b16 %v962
        %v1002 = vunpack.c.l.b16 %v963
        %v1003 = vunpack.c.l.b16 %v964
        %v1004 = vunpack.c.l.b16 %v965
        %v1005 = vunpack.c.l.b16 %v966
        %v1006 = vunpack.c.l.b16 %v967
        %v1007 = vunpack.c.l.b16 %v968
        %v1008 = vpack.c.b16 %v993, %v992
        %v1009 = vpack.c.b16 %v995, %v994
        %v1010 = vpack.c.b16 %v997, %v996
        %v1011 = vpack.c.b16 %v999, %v998
        %v1012 = vpack.c.b16 %v1001, %v1000
        %v1013 = vpack.c.b16 %v1003, %v1002
        %v1014 = vpack.c.b16 %v1005, %v1004
        %v1015 = vpack.c.b16 %v1007, %v1006
        %1024 = vmatprep.subr.bf16.mxu0 0
        %1025 = vmatpush1.bf16.msra.mxu0 %v1015
        %1026 = vmatprep.subr.bf16.mxu0 0
        %1027 = vmatpush1.bf16.msra.mxu0 %v1014
        %1028 = vmatprep.subr.bf16.mxu0 0
        %1029 = vmatpush1.bf16.msra.mxu0 %v1013
        %1030 = vmatprep.subr.bf16.mxu0 0
        %1031 = vmatpush1.bf16.msra.mxu0 %v1012
        %1032 = vmatprep.subr.bf16.mxu0 0
        %1033 = vmatpush1.bf16.msra.mxu0 %v1011
        %1034 = vmatprep.subr.bf16.mxu0 0
        %1035 = vmatpush1.bf16.msra.mxu0 %v1010
        %1036 = vmatprep.subr.bf16.mxu0 0
        %1037 = vmatpush1.bf16.msra.mxu0 %v1009
        %1038 = vmatprep.subr.bf16.mxu0 0
        %1039 = vmatpush1.bf16.msra.mxu0 %v1008
        %1040 = vmatprep.subr.bf16.mxu0 0
        %1041 = vmatpush2.bf16.msra.mxu0 0
        %1042 = vmatprep.subr.bf16.mxu0 0
        %1043 = vmatpush2.bf16.msra.mxu0 0
        %1044 = vmatprep.subr.bf16.mxu0 0
        %1045 = vmatpush2.bf16.msra.mxu0 0
        %1046 = vmatprep.subr.bf16.mxu0 0
        %1047 = vmatpush2.bf16.msra.mxu0 0
        %1048 = vmatprep.subr.bf16.mxu0 0
        %1049 = vmatpush2.bf16.msra.mxu0 0
        %1050 = vmatprep.subr.bf16.mxu0 0
        %1051 = vmatpush2.bf16.msra.mxu0 0
        %1052 = vmatprep.subr.bf16.mxu0 0
        %1053 = vmatpush2.bf16.msra.mxu0 0
        %1054 = vmatprep.subr.bf16.mxu0 0
        %1055 = vmatpush2.bf16.msra.mxu0 0
        %1056 = vmatprep.mubr.bf16.mxu0 0
        %1057 = vmatmul.mubr.bf16.gmra.mxu0 %v951
        %v1058 = vpop.f32.mrf.mxu0
        %v1059 = vadd.f32 %v974, %v1058
        %v1060 = vpop.f32.mrf.mxu0
        %v1061 = vpop.f32.mrf.mxu0
        %v1062 = vadd.f32 %v974, %v1061
        %v1063 = vpop.f32.mrf.mxu0
        %1064 = vmatprep.mubr.bf16.mxu0 0
        %1065 = vmatmul.mubr.bf16.gmra.mxu0 %v952
        %v1066 = vpop.f32.mrf.mxu0
        %v1067 = vadd.f32 %v974, %v1066
        %v1068 = vpop.f32.mrf.mxu0
        %v1069 = vpop.f32.mrf.mxu0
        %v1070 = vadd.f32 %v974, %v1069
        %v1071 = vpop.f32.mrf.mxu0
        %1072 = vdwg.mxu0
        %v1073 = vmax.f32 %v1059, 0.0
        %v1074 = vmax.f32 %v1062, 0.0
        %v1075 = vmax.f32 %v1067, 0.0
        %v1076 = vmax.f32 %v1070, 0.0
        %1077 = vst [vmem:[%s542] sm:$0xff] %v1073
        %1078 = vst [vmem:[%s542 + $0x8] sm:$0xff] %v1074
        %1079 = vst [vmem:[%s542 + $0x10] sm:$0xff] %v1075
        %1080 = vst [vmem:[%s542 + $0x18] sm:$0xff] %v1076
        %v1081 = vld [vmem:[#allocation11] sm:$0xf]
        %v1082 = vld [vmem:[#allocation11 + $0x4] sm:$0xf]
        %v1083 = vld [vmem:[#allocation11 + $0x8] sm:$0xf]
        %v1084 = vld [vmem:[#allocation11 + $0xc] sm:$0xf]
        %v1085 = vld [vmem:[#allocation11 + $0x10] sm:$0xf]
        %v1086 = vld [vmem:[#allocation11 + $0x14] sm:$0xf]
        %v1087 = vld [vmem:[#allocation11 + $0x18] sm:$0xf]
        %v1088 = vld [vmem:[#allocation11 + $0x1c] sm:$0xf]
        %v1089 = vld [vmem:[#allocation11 + $0x20] sm:$0xf]
        %v1090 = vld [vmem:[#allocation11 + $0x24] sm:$0xf]
        %v1091 = vld [vmem:[#allocation11 + $0x28] sm:$0xf]
        %v1092 = vld [vmem:[#allocation11 + $0x2c] sm:$0xf]
        %v1093 = vld [vmem:[#allocation11 + $0x30] sm:$0xf]
        %v1094 = vld [vmem:[#allocation11 + $0x34] sm:$0xf]
        %v1095 = vld [vmem:[#allocation11 + $0x38] sm:$0xf]
        %v1096 = vld [vmem:[#allocation11 + $0x3c] sm:$0xf]
        %v1097 = vld [vmem:[%s10] sm:$0x1]
        %v1099 = vlaneseq
        %v1100 = vshrl.u32 %v1099, 7
        %v1101 = vsub.s32 0, %v1100
        %v1102 = vrot.slane %v1097, %v1101
        %v1120 = vunpack.c.l.b16 %v1081
        %v1121 = vunpack.c.l.b16 %v1082
        %v1122 = vunpack.c.l.b16 %v1083
        %v1123 = vunpack.c.l.b16 %v1084
        %v1124 = vunpack.c.l.b16 %v1085
        %v1125 = vunpack.c.l.b16 %v1086
        %v1126 = vunpack.c.l.b16 %v1087
        %v1127 = vunpack.c.l.b16 %v1088
        %v1128 = vunpack.c.l.b16 %v1089
        %v1129 = vunpack.c.l.b16 %v1090
        %v1130 = vunpack.c.l.b16 %v1091
        %v1131 = vunpack.c.l.b16 %v1092
        %v1132 = vunpack.c.l.b16 %v1093
        %v1133 = vunpack.c.l.b16 %v1094
        %v1134 = vunpack.c.l.b16 %v1095
        %v1135 = vunpack.c.l.b16 %v1096
        %v1136 = vpack.c.b16 %v1121, %v1120
        %v1137 = vpack.c.b16 %v1123, %v1122
        %v1138 = vpack.c.b16 %v1125, %v1124
        %v1139 = vpack.c.b16 %v1127, %v1126
        %v1140 = vpack.c.b16 %v1129, %v1128
        %v1141 = vpack.c.b16 %v1131, %v1130
        %v1142 = vpack.c.b16 %v1133, %v1132
        %v1143 = vpack.c.b16 %v1135, %v1134
        %1152 = vmatprep.subr.bf16.mxu0 0
        %1153 = vmatpush1.bf16.msra.mxu0 %v1143
        %1154 = vmatprep.subr.bf16.mxu0 0
        %1155 = vmatpush1.bf16.msra.mxu0 %v1142
        %1156 = vmatprep.subr.bf16.mxu0 0
        %1157 = vmatpush1.bf16.msra.mxu0 %v1141
        %1158 = vmatprep.subr.bf16.mxu0 0
        %1159 = vmatpush1.bf16.msra.mxu0 %v1140
        %1160 = vmatprep.subr.bf16.mxu0 0
        %1161 = vmatpush1.bf16.msra.mxu0 %v1139
        %1162 = vmatprep.subr.bf16.mxu0 0
        %1163 = vmatpush1.bf16.msra.mxu0 %v1138
        %1164 = vmatprep.subr.bf16.mxu0 0
        %1165 = vmatpush1.bf16.msra.mxu0 %v1137
        %1166 = vmatprep.subr.bf16.mxu0 0
        %1167 = vmatpush1.bf16.msra.mxu0 %v1136
        %1168 = vmatprep.subr.bf16.mxu0 0
        %1169 = vmatpush2.bf16.msra.mxu0 0
        %1170 = vmatprep.subr.bf16.mxu0 0
        %1171 = vmatpush2.bf16.msra.mxu0 0
        %1172 = vmatprep.subr.bf16.mxu0 0
        %1173 = vmatpush2.bf16.msra.mxu0 0
        %1174 = vmatprep.subr.bf16.mxu0 0
        %1175 = vmatpush2.bf16.msra.mxu0 0
        %1176 = vmatprep.subr.bf16.mxu0 0
        %1177 = vmatpush2.bf16.msra.mxu0 0
        %1178 = vmatprep.subr.bf16.mxu0 0
        %1179 = vmatpush2.bf16.msra.mxu0 0
        %1180 = vmatprep.subr.bf16.mxu0 0
        %1181 = vmatpush2.bf16.msra.mxu0 0
        %1182 = vmatprep.subr.bf16.mxu0 0
        %1183 = vmatpush2.bf16.msra.mxu0 0
        %1184 = vmatprep.mubr.bf16.mxu0 0
        %1185 = vmatmul.mubr.bf16.gmra.mxu0 %v825
        %v1186 = vpop.f32.mrf.mxu0
        %v1187 = vadd.f32 %v1102, %v1186
        %v1188 = vpop.f32.mrf.mxu0
        %v1189 = vpop.f32.mrf.mxu0
        %v1190 = vadd.f32 %v1102, %v1189
        %v1191 = vpop.f32.mrf.mxu0
        %1192 = vmatprep.mubr.bf16.mxu0 0
        %1193 = vmatmul.mubr.bf16.gmra.mxu0 %v826
        %v1194 = vpop.f32.mrf.mxu0
        %v1195 = vadd.f32 %v1102, %v1194
        %v1196 = vpop.f32.mrf.mxu0
        %v1197 = vpop.f32.mrf.mxu0
        %v1198 = vadd.f32 %v1102, %v1197
        %v1199 = vpop.f32.mrf.mxu0
        %1200 = vdwg.mxu0
        %v1201 = vxor.u32 %v1187, 2147483648
        %v1202 = vxor.u32 %v1190, 2147483648
        %v1203 = vxor.u32 %v1195, 2147483648
        %v1204 = vxor.u32 %v1198, 2147483648
        %v1205 = vmul.f32 %v1201, 1.442695
        %v1206 = vpow.pop %v1205
        %v1207 = vmul.f32 %v1202, 1.442695
        %v1208 = vpow.pop %v1207
        %v1209 = vmul.f32 %v1203, 1.442695
        %v1210 = vpow.pop %v1209
        %v1211 = vmul.f32 %v1204, 1.442695
        %v1212 = vpow.pop %v1211
        %v1213 = vadd.f32 %v1206, 1.0
        %v1214 = vadd.f32 %v1208, 1.0
        %v1215 = vadd.f32 %v1210, 1.0
        %v1216 = vadd.f32 %v1212, 1.0
        %v1217 = vrcp.pop %v1213
        %v1218 = vmul.f32 1.0, %v1217
        %v1219 = vrcp.pop %v1214
        %v1220 = vmul.f32 1.0, %v1219
        %v1221 = vrcp.pop %v1215
        %v1222 = vmul.f32 1.0, %v1221
        %v1223 = vrcp.pop %v1216
        %v1224 = vmul.f32 1.0, %v1223
        %1225 = vst [vmem:[%s549] sm:$0xff] %v1218
        %1226 = vst [vmem:[%s549 + $0x8] sm:$0xff] %v1220
        %1227 = vst [vmem:[%s549 + $0x10] sm:$0xff] %v1222
        %1228 = vst [vmem:[%s549 + $0x18] sm:$0xff] %v1224
        %s1229 = sand.u32 %s281, 1
        %s1230 = scalar_lea.sflag [#allocation4], %s1229
        %s1231 = sand.u32 %s281, 1
        %s1232 = smul.addr %s1231, 32
        %s1233 = scalar_lea.vmem [#allocation13], %s1232
        %s1234 = sand.u32 %s37, 1
        %s1235 = scalar_lea.sflag [#allocation15], %s1234
        %s1236 = sand.u32 %s307, 1
        %s1237 = smul.addr %s1236, 32
        %s1238 = scalar_lea.vmem [#allocation14], %s1237
        %s1239 = sand.u32 %s37, 1
        %s1240 = scalar_lea.sflag [#allocation15], %s1239
        %s1241 = sand.u32 %s333, 1
        %s1242 = smul.addr %s1241, 32
        %s1243 = scalar_lea.vmem [#allocation16], %s1242
        // Predicated region
        $region89: #{tpu_custom_call.1} parent=63 // pred_check
          %p1244 = pneg %p291
        $region90: #{tpu_custom_call.1} parent=63 // pred_check_branch
          %1246 = sbr.rel (%p1244) target = $region92
        $region91: #{tpu_custom_call.1} parent=63 // pred_region
          %s1247 = smul.u32 4, %s37
          %s1249 = ssub.s32 512, 512
          %1250 = vsyncadd %s1230, %s1249
          %s1251 = smul.addr %s1247, 128
          %s1252 = scalar_lea.hbm %s11, %s1251
          %s1253 = sshll.u32 %s1233, 4
          %s1254 = int_to_ptr.vmem [resolvable:$true] %s1253
          %1259 = dma.vmem_to_hbm [thread:$0]  %s1254, 512, %s1252, %s1230, 128, 128, 8
        $region92: #{tpu_custom_call.1} parent=63 // pred_fallthru
          _
        // Predicated region
        $region93: #{tpu_custom_call.1} parent=63 // pred_check
          %p1260 = pneg %p317
        $region94: #{tpu_custom_call.1} parent=63 // pred_check_branch
          %1262 = sbr.rel (%p1260) target = $region96
        $region95: #{tpu_custom_call.1} parent=63 // pred_region
          %s1263 = smul.u32 4, %s37
          %s1265 = ssub.s32 512, 512
          %1266 = vsyncadd %s1235, %s1265
          %s1267 = smul.addr %s1263, 128
          %s1268 = scalar_lea.hbm %s12, %s1267
          %s1269 = sshll.u32 %s1238, 4
          %s1270 = int_to_ptr.vmem [resolvable:$true] %s1269
          %1275 = dma.vmem_to_hbm [thread:$0]  %s1270, 512, %s1268, %s1235, 128, 128, 8
        $region96: #{tpu_custom_call.1} parent=63 // pred_fallthru
          _
        // Predicated region
        $region97: #{tpu_custom_call.1} parent=63 // pred_check
          %p1276 = pneg %p343
        $region98: #{tpu_custom_call.1} parent=63 // pred_check_branch
          %1278 = sbr.rel (%p1276) target = $region100
        $region99: #{tpu_custom_call.1} parent=63 // pred_region
          %s1279 = smul.u32 4, %s37
          %s1281 = ssub.s32 512, 512
          %1282 = vsyncadd %s1240, %s1281
          %s1283 = smul.addr %s1279, 128
          %s1284 = scalar_lea.hbm %s13, %s1283
          %s1285 = sshll.u32 %s1243, 4
          %s1286 = int_to_ptr.vmem [resolvable:$true] %s1285
          %1291 = dma.vmem_to_hbm [thread:$0]  %s1286, 512, %s1284, %s1240, 128, 128, 8
        $region100: #{tpu_custom_call.1} parent=63 // pred_fallthru
          _
      $region64: #{tpu_custom_call.1} parent=5 // pred_fallthru
        _
      %p1292 = scmp.le.s32.totalorder 2, %s32
      // Predicated region
      $region101: #{tpu_custom_call.1} parent=5 // pred_check
        %p1293 = pneg %p1292
      $region102: #{tpu_custom_call.1} parent=5 // pred_check_branch
        %1295 = sbr.rel (%p1293) target = $region104
      $region103: #{tpu_custom_call.1} parent=5 // pred_region
        %s1296 = ssub.s32 %s32, 2
        // Predicated region
        $region105: #{tpu_custom_call.1} parent=103 // pred_check
          %p1297 = pneg %p297
        $region106: #{tpu_custom_call.1} parent=103 // pred_check_branch
          %1299 = sbr.rel (%p1297) target = $region108
        $region107: #{tpu_custom_call.1} parent=103 // pred_region
          %s1300 = sand.u32 %s282, 1
          %s1301 = scalar_lea.sflag [#allocation4], %s1300
          %s1302 = sand.u32 %s282, 1
          %s1303 = smul.addr %s1302, 32
          %s1304 = scalar_lea.vmem [#allocation13], %s1303
          %1305 = dma.done %s1301, 512
        $region108: #{tpu_custom_call.1} parent=103 // pred_fallthru
          _
        // Predicated region
        $region109: #{tpu_custom_call.1} parent=103 // pred_check
          %p1306 = pneg %p323
        $region110: #{tpu_custom_call.1} parent=103 // pred_check_branch
          %1308 = sbr.rel (%p1306) target = $region112
        $region111: #{tpu_custom_call.1} parent=103 // pred_region
          %s1309 = sand.u32 %s38, 1
          %s1310 = scalar_lea.sflag [#allocation15], %s1309
          %s1311 = sand.u32 %s308, 1
          %s1312 = smul.addr %s1311, 32
          %s1313 = scalar_lea.vmem [#allocation14], %s1312
          %1314 = dma.done %s1310, 512
        $region112: #{tpu_custom_call.1} parent=103 // pred_fallthru
          _
        // Predicated region
        $region113: #{tpu_custom_call.1} parent=103 // pred_check
          %p1315 = pneg %p349
        $region114: #{tpu_custom_call.1} parent=103 // pred_check_branch
          %1317 = sbr.rel (%p1315) target = $region116
        $region115: #{tpu_custom_call.1} parent=103 // pred_region
          %s1318 = sand.u32 %s38, 1
          %s1319 = scalar_lea.sflag [#allocation15], %s1318
          %s1320 = sand.u32 %s334, 1
          %s1321 = smul.addr %s1320, 32
          %s1322 = scalar_lea.vmem [#allocation16], %s1321
          %1323 = dma.done %s1319, 512
        $region116: #{tpu_custom_call.1} parent=103 // pred_fallthru
          _
      $region104: #{tpu_custom_call.1} parent=5 // pred_fallthru
        _
    $region6: #{tpu_custom_call.1} parent=1 // loop_footer
      %s36 = sadd.s32 1, %s32
    $region7: #{tpu_custom_call.1} parent=1 // loop_footer_branch
      %31 = sbr.rel target = $region3
    $region8: #{tpu_custom_call.1} parent=1 // loop_exit
      _
    %1324 = vsyncpa [#allocation3], 1
    %s1325 = scalar_lea.sflag [#allocation3], 1
    %1326 = vsyncpa %s1325, 1
    %1327 = vsyncpa [#allocation6], 1
    %1328 = vsyncpa [#allocation9], 1
    %1329 = vsyncpa [#allocation12], 1
    %1330 = vsyncpa [#allocation4], 1
    %s1331 = scalar_lea.sflag [#allocation4], 1
    %1332 = vsyncpa %s1331, 1
    %1333 = vsyncpa [#allocation15], 1
    %s1334 = scalar_lea.sflag [#allocation15], 1
    %1335 = vsyncpa %s1334, 1

</llo_original>
